<compile_context>
chip_gen: v7x
topology: tpu7x:2x2x1
jax: 0.10.0
libtpu: 0.0.40
codegen_flags: <defaults>
</compile_context>

<pallas_src>
import functools

import numpy as np
import jax
import jax.numpy as jnp
from jax.experimental import pallas as pl
from jax.experimental.pallas import tpu as pltpu


# --------------------------------------------------------------------- kernel

def _eres_kernel(xs_ref, xres_ref, w1_ref, b1_ref, w2_ref, b2_ref,
                 w3t_ref, b3_ref, o_ref, h1p_ref, *, use_fused_k):
    Bt, TH4, Wp, Cin = xs_ref.shape
    TH = TH4 - 4
    W = Wp - 2
    Cout = h1p_ref.shape[-1]
    TH2 = TH + 2
    M1 = Bt * TH2 * W            # conv1 computes TH+2 rows (strip + 1-row halo)
    M2 = Bt * TH * W

    def conv3x3(tap, w_ref, b_row, M, C):
        # tap(dy, dx) -> (Bt, rows, W, C) f32.  MXU operands are cast to bf16.
        if use_fused_k:
            # fused K = 9*C GEMM (best when C is tiny).
            cols = jnp.concatenate(
                [tap(dy, dx).reshape(M, C) for dy in range(3) for dx in range(3)],
                axis=1)                                            # (M, 9*C) f32
            acc = jnp.dot(cols.astype(jnp.bfloat16), w_ref[...],
                          preferred_element_type=jnp.float32)
        else:
            # 9 accumulated tap GEMMs (no im2col slab; best when C >= ~128).
            acc = jnp.zeros((M, w_ref.shape[-1]), jnp.float32)
            k = 0
            for dy in range(3):
                for dx in range(3):
                    acc = acc + jnp.dot(
                        tap(dy, dx).reshape(M, C).astype(jnp.bfloat16),
                        w_ref[k], preferred_element_type=jnp.float32)
                    k += 1
        return jnp.maximum(acc + b_row, 0.0)                       # (M, Cout) f32

    # ---- conv1 (3x3) + ReLU over the strip incl. one halo row on each side.
    xs = xs_ref[...].astype(jnp.float32)                           # (Bt, TH+4, Wp, Cin)
    h1 = conv3x3(lambda dy, dx: xs[:, dy:dy + TH2, dx:dx + W, :],
                 w1_ref, b1_ref[...], M1, Cin)
    h1 = h1.reshape(Bt, TH2, W, Cout)

    # ---- zero-padded intermediate lives in a persistent VMEM scratch:
    # dense interior store + thin border-column stores (no full-copy concats).
    h1p_ref[:, :, 1:W + 1, :] = h1
    zcol = jnp.zeros((Bt, TH2, 1, Cout), jnp.float32)
    h1p_ref[:, :, 0:1, :] = zcol
    h1p_ref[:, :, W + 1:W + 2, :] = zcol

    # Halo rows that fall outside the image are conv1-over-extended-zeros garbage;
    # conv2's zero padding needs them to be exactly zero.  Only the first / last
    # row strip can hit this, so zero them conditionally (no iota / where pass).
    t = pl.program_id(1)
    zrow = jnp.zeros((Bt, 1, Wp, Cout), jnp.float32)

    @pl.when(t == 0)
    def _():
        h1p_ref[:, 0:1, :, :] = zrow

    @pl.when(t == pl.num_programs(1) - 1)
    def _():
        h1p_ref[:, TH + 1:TH + 2, :, :] = zrow

    # ---- conv2 (3x3) + ReLU
    h1p = h1p_ref[...]                                             # (Bt, TH+2, W+2, Cout)
    h2 = conv3x3(lambda dy, dx: h1p[:, dy:dy + TH, dx:dx + W, :],
                 w2_ref, b2_ref[...], M2, Cout)

    # ---- conv3 (1x1) computed transposed per image -> lane-dense (Cout, TH*W);
    # residual add + final ReLU + store stay lane-dense (last dim = TH*W).
    h2b = h2.reshape(Bt, TH * W, Cout).astype(jnp.bfloat16)
    w3 = w3t_ref[...]
    b3 = b3_ref[...]
    for bi in range(Bt):
        h3 = jax.lax.dot_general(w3, h2b[bi], (((1,), (1,)), ((), ())),
                                 preferred_element_type=jnp.float32)   # (Cout, TH*W)
        o_ref[bi] = jnp.maximum(h3 + b3 + xres_ref[bi], 0.0).astype(o_ref.dtype)


# ----------------------------------------------------------------- tile logic

def _round_up(x, m):
    return (x + m - 1) // m * m


def _padded_bytes(shape, dtype):
    """Array bytes after (sublane, lane) tile padding."""
    bpe = np.dtype(dtype).itemsize
    dims = list(shape) if len(shape) >= 2 else [1] + list(shape)
    lanes = _round_up(dims[-1], 128)
    subl = _round_up(dims[-2], 32 // bpe)
    rest = 1
    for d in dims[:-2]:
        rest *= d
    return rest * subl * lanes * bpe


def _vmem_capacity_bytes():
    try:
        cap = getattr(pltpu.get_tpu_info(), "vmem_capacity_bytes", None)
        if cap:
            return int(cap)
    except Exception:
        pass
    return 64 * 1024 * 1024          # conservative fallback (v7x per-core VMEM)


def _step_bytes(Bt, TH, W, Cin, Cout, use_fused_k):
    """Rough per-grid-step VMEM footprint (tile-padded, incl. double buffers)."""
    bf16, f32 = jnp.bfloat16, jnp.float32
    Wp, TH2, TH4, THW = W + 2, TH + 2, TH + 4, TH * W
    M1, M2 = Bt * TH2 * W, Bt * THW
    est = 2 * (_padded_bytes((Bt, TH4, Wp, Cin), bf16)          # double-buffered blocks
               + _padded_bytes((Bt, Cin, THW), f32)
               + _padded_bytes((Bt, Cout, THW), f32))
    est += 2 * (_padded_bytes((9 * Cin, Cout), bf16)            # resident weights/biases
                + _padded_bytes((9 * Cout, Cout), bf16)
                + _padded_bytes((Cout, Cin), bf16)
                + 2 * _padded_bytes((1, Cout), f32)
                + _padded_bytes((Cout, 1), f32))
    est += _padded_bytes((Bt, TH2, Wp, Cout), f32)              # h1p scratch
    est += _padded_bytes((Bt, TH4, Wp, Cin), f32)               # upcast strip
    if use_fused_k:
        est += (_padded_bytes((M1, 9 * Cin), f32) + _padded_bytes((M1, 9 * Cin), bf16)
                + _padded_bytes((M2, 9 * Cout), f32) + _padded_bytes((M2, 9 * Cout), bf16))
    else:
        est += 2 * (_padded_bytes((M1, Cin), f32) + _padded_bytes((M2, Cout), f32))
    est += (2 * _padded_bytes((M1, Cout), f32) + 2 * _padded_bytes((M2, Cout), f32)
            + _padded_bytes((M2, Cout), bf16) + 2 * _padded_bytes((Bt, Cout, THW), f32))
    return int(1.4 * est)


def _pick_tiles(B, H, W, Cin, Cout, use_fused_k, budget):
    """Largest (batch_tile, row_tile) whose footprint fits the VMEM budget."""
    bts = [d for d in range(min(B, 8), 0, -1) if B % d == 0]
    ths = [d for d in range(H, 0, -1)
           if H % d == 0 and (d == H or (d * W) % 128 == 0)]   # lane-dense out blocks
    best = None
    for bt in bts:
        for th in ths:
            if _step_bytes(bt, th, W, Cin, Cout, use_fused_k) <= budget:
                if (best is None or bt * th > best[0] * best[1]
                        or (bt * th == best[0] * best[1] and th > best[1])):
                    best = (bt, th)
    if best is None:
        best = (1, ths[-1])          # smallest legal tile
    return best


# -------------------------------------------------------------------- wrapper

def eresidual_block(x_nchw, params, *, batch_tile=None, row_tile=None,
                    use_fused_k=None):
    """EResidualBlock forward. x_nchw: (B, C, H, W) f32; params in PyTorch OIHW form."""
    w1, b1, w2, b2, w3, b3 = params
    B, Cin, H, W = x_nchw.shape
    Cout = w1.shape[0]
    assert Cin == Cout, "residual add requires in_channels == out_channels"

    if use_fused_k is None:
        use_fused_k = Cin < 128      # fused K=9*Cin GEMM only pays off for tiny C

    cap = _vmem_capacity_bytes()
    budget = int(0.55 * cap)
    if batch_tile is None or row_tile is None:
        bt_auto, th_auto = _pick_tiles(B, H, W, Cin, Cout, use_fused_k, budget)
        Bt = batch_tile if batch_tile is not None else bt_auto
        TH = row_tile if row_tile is not None else th_auto
    else:
        Bt, TH = batch_tile, row_tile
    assert B % Bt == 0 and H % TH == 0
    assert TH == H or (TH * W) % 128 == 0, \
        "row tile must cover the image or give a 128-multiple flat width"

    nT, nB = H // TH, B // Bt
    Wp, THW, HW = W + 2, TH * W, H * W
    x = x_nchw.astype(jnp.float32)

    # bf16 halo strips (padded-image rows [t*TH-2, t*TH+TH+2)) feed the 3x3 taps;
    # the f32 NCHW-flat copy feeds the lane-dense residual / output path.
    x_pad = jnp.pad(jnp.transpose(x, (0, 2, 3, 1)),
                    ((0, 0), (2, 2), (1, 1), (0, 0))).astype(jnp.bfloat16)
    x_strips = jnp.concatenate(
        [x_pad[:, t * TH:t * TH + TH + 4] for t in range(nT)],
        axis=0)                                                  # (nT*B, TH+4, Wp, Cin)
    x_res = x.reshape(B, Cin, HW)

    def flat3x3(w):  # OIHW -> (9*Cin, Cout), row order (dy, dx, ci)
        return jnp.transpose(w, (2, 3, 1, 0)).reshape(9 * w.shape[1], w.shape[0])

    w1_k = flat3x3(w1).astype(jnp.bfloat16)
    w2_k = flat3x3(w2).astype(jnp.bfloat16)
    if use_fused_k:
        w1_spec = pl.BlockSpec((9 * Cin, Cout), lambda b, t: (0, 0))
        w2_spec = pl.BlockSpec((9 * Cout, Cout), lambda b, t: (0, 0))
    else:
        w1_k = w1_k.reshape(9, Cin, Cout)
        w2_k = w2_k.reshape(9, Cout, Cout)
        w1_spec = pl.BlockSpec((9, Cin, Cout), lambda b, t: (0, 0, 0))
        w2_spec = pl.BlockSpec((9, Cout, Cout), lambda b, t: (0, 0, 0))
    w3_t = w3[:, :, 0, 0].astype(jnp.bfloat16)                   # (Cout, Cin)
    b1_r = b1.reshape(1, Cout).astype(jnp.float32)
    b2_r = b2.reshape(1, Cout).astype(jnp.float32)
    b3_r = b3.reshape(Cout, 1).astype(jnp.float32)

    est = _step_bytes(Bt, TH, W, Cin, Cout, use_fused_k)
    vmem_limit = int(min(0.85 * cap, max(32 * 2 ** 20, 1.25 * est)))

    grid_spec = pltpu.PrefetchScalarGridSpec(
        num_scalar_prefetch=0,
        grid=(nB, nT),
        in_specs=[
            # halo strip: strip-major layout, block index t*nB + b (block size Bt)
            pl.BlockSpec((Bt, TH + 4, Wp, Cin), lambda b, t: (t * nB + b, 0, 0, 0)),
            pl.BlockSpec((Bt, Cin, THW), lambda b, t: (b, 0, t)),   # residual (NCHW-flat)
            w1_spec,
            pl.BlockSpec((1, Cout), lambda b, t: (0, 0)),           # b1
            w2_spec,
            pl.BlockSpec((1, Cout), lambda b, t: (0, 0)),           # b2
            pl.BlockSpec((Cout, Cin), lambda b, t: (0, 0)),         # w3 (1x1)
            pl.BlockSpec((Cout, 1), lambda b, t: (0, 0)),           # b3
        ],
        out_specs=pl.BlockSpec((Bt, Cout, THW), lambda b, t: (b, 0, t)),
        scratch_shapes=[pltpu.VMEM((Bt, TH + 2, Wp, Cout), jnp.float32)],
    )

    out_flat = pl.pallas_call(
        functools.partial(_eres_kernel, use_fused_k=use_fused_k),
        out_shape=jax.ShapeDtypeStruct((B, Cout, HW), x.dtype),
        grid_spec=grid_spec,
        compiler_params=pltpu.CompilerParams(
            dimension_semantics=("parallel", "parallel"),   # batch & rows across cores
            vmem_limit_bytes=vmem_limit),
    )(x_strips, x_res, w1_k, b1_r, w2_k, b2_r, w3_t, b3_r)

    return out_flat.reshape(B, Cout, H, W)


# ----------------------------------------------------------- reference & test

def eresidual_block_ref(x_nchw, params):
    """Pure-JAX reference (lax convs, f32) for validation."""
    w1, b1, w2, b2, w3, b3 = params
    x = jnp.transpose(x_nchw, (0, 2, 3, 1))
    dn = ('NHWC', 'HWIO', 'NHWC')

    def conv(h, w, b, pad):
        w_hwio = jnp.transpose(w, (2, 3, 1, 0))
        y = jax.lax.conv_general_dilated(h, w_hwio, (1, 1), pad,
                                         dimension_numbers=dn)
        return y + b.reshape(1, 1, 1, -1)

    h = jax.nn.relu(conv(x, w1, b1, [(1, 1), (1, 1)]))
    h = jax.nn.relu(conv(h, w2, b2, [(1, 1), (1, 1)]))
    h = conv(h, w3, b3, [(0, 0), (0, 0)])
    return jnp.transpose(jax.nn.relu(h + x), (0, 3, 1, 2))


def init_params(key, channels):
    """Deterministic init; shapes match nn.Conv2d(c, c, 3/1, groups=1)."""
    ks = jax.random.split(key, 6)
    c = channels
    s3 = 1.0 / (c * 9) ** 0.5
    s1 = 1.0 / c ** 0.5
    w1 = jax.random.uniform(ks[0], (c, c, 3, 3), jnp.float32, -s3, s3)
    b1 = jax.random.uniform(ks[1], (c,), jnp.float32, -s3, s3)
    w2 = jax.random.uniform(ks[2], (c, c, 3, 3), jnp.float32, -s3, s3)
    b2 = jax.random.uniform(ks[3], (c,), jnp.float32, -s3, s3)
    w3 = jax.random.uniform(ks[4], (c, c, 1, 1), jnp.float32, -s1, s1)
    b3 = jax.random.uniform(ks[5], (c,), jnp.float32, -s1, s1)
    return (w1, b1, w2, b2, w3, b3)


if __name__ == "__main__":
    key = jax.random.PRNGKey(0)
    kx, kp = jax.random.split(key)

    B, C, H, W = 2, 4, 16, 16
    x = jax.random.normal(kx, (B, C, H, W), jnp.float32)
    params = init_params(kp, C)
    ref = jax.block_until_ready(eresidual_block_ref(x, params))

    configs = [
        dict(batch_tile=1, row_tile=8),                       # row tiling + halo masking
        dict(),                                                # auto tiles (batch folding)
        dict(batch_tile=1, row_tile=8, use_fused_k=False),     # tap-accumulation path
    ]
    for cfg in configs:
        out = jax.block_until_ready(eresidual_block(x, params, **cfg))
        assert out.shape == (B, C, H, W)
        err = float(jnp.max(jnp.abs(out - ref)))
        # bf16 MXU operands -> loosened tolerance vs. the f32 reference.
        assert jnp.allclose(out, ref, atol=3e-2, rtol=3e-2), \
            f"cfg={cfg} max abs err {err}"

    print("KERNEL_OK")
</pallas_src>

<mosaic_0001>
module attributes {stable_mosaic.version = 11 : i64} {
  func.func @_eres_kernel(%arg0: i32, %arg1: i32, %arg2: memref<1x12x18x4xbf16, #tpu.memory_space<vmem>>, %arg3: memref<1x4x128xf32, #tpu.memory_space<vmem>>, %arg4: memref<36x4xbf16, #tpu.memory_space<vmem>>, %arg5: memref<1x4xf32, #tpu.memory_space<vmem>>, %arg6: memref<36x4xbf16, #tpu.memory_space<vmem>>, %arg7: memref<1x4xf32, #tpu.memory_space<vmem>>, %arg8: memref<4x4xbf16, #tpu.memory_space<vmem>>, %arg9: memref<4x1xf32, #tpu.memory_space<vmem>>, %arg10: memref<1x4x128xf32, #tpu.memory_space<vmem>>, %arg11: memref<1x10x18x4xf32, #tpu.memory_space<vmem>>) attributes {dimension_semantics = [#tpu.dimension_semantics<parallel>, #tpu.dimension_semantics<parallel>], iteration_bounds = array<i64: 2, 2>, scalar_prefetch = 0 : i64, scratch_operands = 1 : i64, tpu.core_type = #tpu.core_type<tc>, window_params = [{transform_indices = @transform_0, window_bounds = array<i64: 1, 12, 18, 4>}, {transform_indices = @transform_1, window_bounds = array<i64: 1, 4, 128>}, {pipeline_mode = #tpu.pipeline_mode<synchronous>, transform_indices = @transform_2, window_bounds = array<i64: 36, 4>}, {pipeline_mode = #tpu.pipeline_mode<synchronous>, transform_indices = @transform_3, window_bounds = array<i64: 1, 4>}, {pipeline_mode = #tpu.pipeline_mode<synchronous>, transform_indices = @transform_4, window_bounds = array<i64: 36, 4>}, {pipeline_mode = #tpu.pipeline_mode<synchronous>, transform_indices = @transform_5, window_bounds = array<i64: 1, 4>}, {pipeline_mode = #tpu.pipeline_mode<synchronous>, transform_indices = @transform_6, window_bounds = array<i64: 4, 4>}, {pipeline_mode = #tpu.pipeline_mode<synchronous>, transform_indices = @transform_7, window_bounds = array<i64: 4, 1>}, {transform_indices = @transform_8, window_bounds = array<i64: 1, 4, 128>}]} {
    %c0 = arith.constant 0 : index
    %c0_0 = arith.constant 0 : index
    %c0_1 = arith.constant 0 : index
    %c0_2 = arith.constant 0 : index
    %0 = vector.load %arg2[%c0, %c0_0, %c0_1, %c0_2] : memref<1x12x18x4xbf16, #tpu.memory_space<vmem>>, vector<1x12x18x4xbf16>
    %1 = arith.extf %0 : vector<1x12x18x4xbf16> to vector<1x12x18x4xf32>
    %c0_3 = arith.constant 0 : index
    %c0_4 = arith.constant 0 : index
    %2 = vector.load %arg5[%c0_3, %c0_4] : memref<1x4xf32, #tpu.memory_space<vmem>>, vector<1x4xf32>
    %3 = vector.extract_strided_slice %1 {offsets = [0, 0, 0, 0], sizes = [1, 10, 16, 4], strides = [1, 1, 1, 1]} : vector<1x12x18x4xf32> to vector<1x10x16x4xf32>
    %4 = vector.shape_cast %3 : vector<1x10x16x4xf32> to vector<160x4xf32>
    %5 = vector.extract_strided_slice %1 {offsets = [0, 0, 1, 0], sizes = [1, 10, 16, 4], strides = [1, 1, 1, 1]} : vector<1x12x18x4xf32> to vector<1x10x16x4xf32>
    %6 = vector.shape_cast %5 : vector<1x10x16x4xf32> to vector<160x4xf32>
    %7 = vector.extract_strided_slice %1 {offsets = [0, 0, 2, 0], sizes = [1, 10, 16, 4], strides = [1, 1, 1, 1]} : vector<1x12x18x4xf32> to vector<1x10x16x4xf32>
    %8 = vector.shape_cast %7 : vector<1x10x16x4xf32> to vector<160x4xf32>
    %9 = vector.extract_strided_slice %1 {offsets = [0, 1, 0, 0], sizes = [1, 10, 16, 4], strides = [1, 1, 1, 1]} : vector<1x12x18x4xf32> to vector<1x10x16x4xf32>
    %10 = vector.shape_cast %9 : vector<1x10x16x4xf32> to vector<160x4xf32>
    %11 = vector.extract_strided_slice %1 {offsets = [0, 1, 1, 0], sizes = [1, 10, 16, 4], strides = [1, 1, 1, 1]} : vector<1x12x18x4xf32> to vector<1x10x16x4xf32>
    %12 = vector.shape_cast %11 : vector<1x10x16x4xf32> to vector<160x4xf32>
    %13 = vector.extract_strided_slice %1 {offsets = [0, 1, 2, 0], sizes = [1, 10, 16, 4], strides = [1, 1, 1, 1]} : vector<1x12x18x4xf32> to vector<1x10x16x4xf32>
    %14 = vector.shape_cast %13 : vector<1x10x16x4xf32> to vector<160x4xf32>
    %15 = vector.extract_strided_slice %1 {offsets = [0, 2, 0, 0], sizes = [1, 10, 16, 4], strides = [1, 1, 1, 1]} : vector<1x12x18x4xf32> to vector<1x10x16x4xf32>
    %16 = vector.shape_cast %15 : vector<1x10x16x4xf32> to vector<160x4xf32>
    %17 = vector.extract_strided_slice %1 {offsets = [0, 2, 1, 0], sizes = [1, 10, 16, 4], strides = [1, 1, 1, 1]} : vector<1x12x18x4xf32> to vector<1x10x16x4xf32>
    %18 = vector.shape_cast %17 : vector<1x10x16x4xf32> to vector<160x4xf32>
    %19 = vector.extract_strided_slice %1 {offsets = [0, 2, 2, 0], sizes = [1, 10, 16, 4], strides = [1, 1, 1, 1]} : vector<1x12x18x4xf32> to vector<1x10x16x4xf32>
    %20 = vector.shape_cast %19 : vector<1x10x16x4xf32> to vector<160x4xf32>
    %21 = tpu.concatenate %4, %6, %8, %10, %12, %14, %16, %18, %20 in 1 : vector<160x4xf32>, vector<160x4xf32>, vector<160x4xf32>, vector<160x4xf32>, vector<160x4xf32>, vector<160x4xf32>, vector<160x4xf32>, vector<160x4xf32>, vector<160x4xf32> -> vector<160x36xf32>
    %22 = arith.truncf %21 : vector<160x36xf32> to vector<160x36xbf16>
    %c0_5 = arith.constant 0 : index
    %c0_6 = arith.constant 0 : index
    %23 = vector.load %arg4[%c0_5, %c0_6] : memref<36x4xbf16, #tpu.memory_space<vmem>>, vector<36x4xbf16>
    %cst = arith.constant dense<0.000000e+00> : vector<160x4xf32>
    %24 = tpu.matmul %22, %23, %cst {dimension_numbers = #tpu.dot_dimension_numbers<[1], [0], [0], [1], [0, 0, 1, 1], [], []>} : vector<160x36xbf16>, vector<36x4xbf16>, vector<160x4xf32> -> vector<160x4xf32>
    %25 = vector.broadcast %2 : vector<1x4xf32> to vector<160x4xf32>
    %26 = arith.addf %24, %25 : vector<160x4xf32>
    %cst_7 = arith.constant 0.000000e+00 : f32
    %27 = vector.broadcast %cst_7 : f32 to vector<160x4xf32>
    %28 = arith.maximumf %26, %27 : vector<160x4xf32>
    %29 = vector.shape_cast %28 : vector<160x4xf32> to vector<1x10x16x4xf32>
    %c0_8 = arith.constant 0 : index
    %c0_9 = arith.constant 0 : index
    %c1 = arith.constant 1 : index
    %c0_10 = arith.constant 0 : index
    %30 = vector.load %arg11[%c0_8, %c0_9, %c1, %c0_10] : memref<1x10x18x4xf32, #tpu.memory_space<vmem>>, vector<1x10x16x4xf32>
    tpu.vector_store %arg11[%c0_8, %c0_9, %c1, %c0_10], %29 {strides = array<i32>} : memref<1x10x18x4xf32, #tpu.memory_space<vmem>>, vector<1x10x16x4xf32>,
    %cst_11 = arith.constant 0.000000e+00 : f32
    %31 = vector.broadcast %cst_11 : f32 to vector<1x10x1x4xf32>
    %c0_12 = arith.constant 0 : index
    %c0_13 = arith.constant 0 : index
    %c0_14 = arith.constant 0 : index
    %c0_15 = arith.constant 0 : index
    %32 = vector.load %arg11[%c0_12, %c0_13, %c0_14, %c0_15] : memref<1x10x18x4xf32, #tpu.memory_space<vmem>>, vector<1x10x1x4xf32>
    tpu.vector_store %arg11[%c0_12, %c0_13, %c0_14, %c0_15], %31 {strides = array<i32>} : memref<1x10x18x4xf32, #tpu.memory_space<vmem>>, vector<1x10x1x4xf32>,
    %c0_16 = arith.constant 0 : index
    %c0_17 = arith.constant 0 : index
    %c17 = arith.constant 17 : index
    %c0_18 = arith.constant 0 : index
    %33 = vector.load %arg11[%c0_16, %c0_17, %c17, %c0_18] : memref<1x10x18x4xf32, #tpu.memory_space<vmem>>, vector<1x10x1x4xf32>
    tpu.vector_store %arg11[%c0_16, %c0_17, %c17, %c0_18], %31 {strides = array<i32>} : memref<1x10x18x4xf32, #tpu.memory_space<vmem>>, vector<1x10x1x4xf32>,
    %cst_19 = arith.constant 0.000000e+00 : f32
    %34 = vector.broadcast %cst_19 : f32 to vector<1x1x18x4xf32>
    %c0_i32 = arith.constant 0 : i32
    %35 = arith.cmpi eq, %arg1, %c0_i32 : i32
    %36 = arith.extui %35 : i1 to i32
    %c0_i32_20 = arith.constant 0 : i32
    %37 = arith.cmpi ne, %36, %c0_i32_20 : i32
    scf.if %37 {
      %c0_44 = arith.constant 0 : index
      %c0_45 = arith.constant 0 : index
      %c0_46 = arith.constant 0 : index
      %c0_47 = arith.constant 0 : index
      %85 = vector.load %arg11[%c0_44, %c0_45, %c0_46, %c0_47] : memref<1x10x18x4xf32, #tpu.memory_space<vmem>>, vector<1x1x18x4xf32>
      tpu.vector_store %arg11[%c0_44, %c0_45, %c0_46, %c0_47], %34 {strides = array<i32>} : memref<1x10x18x4xf32, #tpu.memory_space<vmem>>, vector<1x1x18x4xf32>,
    } else {
    }
    %c1_i32 = arith.constant 1 : i32
    %38 = arith.cmpi eq, %arg1, %c1_i32 : i32
    %39 = arith.extui %38 : i1 to i32
    %c0_i32_21 = arith.constant 0 : i32
    %40 = arith.cmpi ne, %39, %c0_i32_21 : i32
    scf.if %40 {
      %c0_44 = arith.constant 0 : index
      %c9 = arith.constant 9 : index
      %c0_45 = arith.constant 0 : index
      %c0_46 = arith.constant 0 : index
      %85 = vector.load %arg11[%c0_44, %c9, %c0_45, %c0_46] : memref<1x10x18x4xf32, #tpu.memory_space<vmem>>, vector<1x1x18x4xf32>
      tpu.vector_store %arg11[%c0_44, %c9, %c0_45, %c0_46], %34 {strides = array<i32>} : memref<1x10x18x4xf32, #tpu.memory_space<vmem>>, vector<1x1x18x4xf32>,
    } else {
    }
    %c0_22 = arith.constant 0 : index
    %c0_23 = arith.constant 0 : index
    %c0_24 = arith.constant 0 : index
    %c0_25 = arith.constant 0 : index
    %41 = vector.load %arg11[%c0_22, %c0_23, %c0_24, %c0_25] : memref<1x10x18x4xf32, #tpu.memory_space<vmem>>, vector<1x10x18x4xf32>
    %c0_26 = arith.constant 0 : index
    %c0_27 = arith.constant 0 : index
    %42 = vector.load %arg7[%c0_26, %c0_27] : memref<1x4xf32, #tpu.memory_space<vmem>>, vector<1x4xf32>
    %43 = vector.extract_strided_slice %41 {offsets = [0, 0, 0, 0], sizes = [1, 8, 16, 4], strides = [1, 1, 1, 1]} : vector<1x10x18x4xf32> to vector<1x8x16x4xf32>
    %44 = vector.shape_cast %43 : vector<1x8x16x4xf32> to vector<128x4xf32>
    %45 = vector.extract_strided_slice %41 {offsets = [0, 0, 1, 0], sizes = [1, 8, 16, 4], strides = [1, 1, 1, 1]} : vector<1x10x18x4xf32> to vector<1x8x16x4xf32>
    %46 = vector.shape_cast %45 : vector<1x8x16x4xf32> to vector<128x4xf32>
    %47 = vector.extract_strided_slice %41 {offsets = [0, 0, 2, 0], sizes = [1, 8, 16, 4], strides = [1, 1, 1, 1]} : vector<1x10x18x4xf32> to vector<1x8x16x4xf32>
    %48 = vector.shape_cast %47 : vector<1x8x16x4xf32> to vector<128x4xf32>
    %49 = vector.extract_strided_slice %41 {offsets = [0, 1, 0, 0], sizes = [1, 8, 16, 4], strides = [1, 1, 1, 1]} : vector<1x10x18x4xf32> to vector<1x8x16x4xf32>
    %50 = vector.shape_cast %49 : vector<1x8x16x4xf32> to vector<128x4xf32>
    %51 = vector.extract_strided_slice %41 {offsets = [0, 1, 1, 0], sizes = [1, 8, 16, 4], strides = [1, 1, 1, 1]} : vector<1x10x18x4xf32> to vector<1x8x16x4xf32>
    %52 = vector.shape_cast %51 : vector<1x8x16x4xf32> to vector<128x4xf32>
    %53 = vector.extract_strided_slice %41 {offsets = [0, 1, 2, 0], sizes = [1, 8, 16, 4], strides = [1, 1, 1, 1]} : vector<1x10x18x4xf32> to vector<1x8x16x4xf32>
    %54 = vector.shape_cast %53 : vector<1x8x16x4xf32> to vector<128x4xf32>
    %55 = vector.extract_strided_slice %41 {offsets = [0, 2, 0, 0], sizes = [1, 8, 16, 4], strides = [1, 1, 1, 1]} : vector<1x10x18x4xf32> to vector<1x8x16x4xf32>
    %56 = vector.shape_cast %55 : vector<1x8x16x4xf32> to vector<128x4xf32>
    %57 = vector.extract_strided_slice %41 {offsets = [0, 2, 1, 0], sizes = [1, 8, 16, 4], strides = [1, 1, 1, 1]} : vector<1x10x18x4xf32> to vector<1x8x16x4xf32>
    %58 = vector.shape_cast %57 : vector<1x8x16x4xf32> to vector<128x4xf32>
    %59 = vector.extract_strided_slice %41 {offsets = [0, 2, 2, 0], sizes = [1, 8, 16, 4], strides = [1, 1, 1, 1]} : vector<1x10x18x4xf32> to vector<1x8x16x4xf32>
    %60 = vector.shape_cast %59 : vector<1x8x16x4xf32> to vector<128x4xf32>
    %61 = tpu.concatenate %44, %46, %48, %50, %52, %54, %56, %58, %60 in 1 : vector<128x4xf32>, vector<128x4xf32>, vector<128x4xf32>, vector<128x4xf32>, vector<128x4xf32>, vector<128x4xf32>, vector<128x4xf32>, vector<128x4xf32>, vector<128x4xf32> -> vector<128x36xf32>
    %62 = arith.truncf %61 : vector<128x36xf32> to vector<128x36xbf16>
    %c0_28 = arith.constant 0 : index
    %c0_29 = arith.constant 0 : index
    %63 = vector.load %arg6[%c0_28, %c0_29] : memref<36x4xbf16, #tpu.memory_space<vmem>>, vector<36x4xbf16>
    %cst_30 = arith.constant dense<0.000000e+00> : vector<128x4xf32>
    %64 = tpu.matmul %62, %63, %cst_30 {dimension_numbers = #tpu.dot_dimension_numbers<[1], [0], [0], [1], [0, 0, 1, 1], [], []>} : vector<128x36xbf16>, vector<36x4xbf16>, vector<128x4xf32> -> vector<128x4xf32>
    %65 = vector.broadcast %42 : vector<1x4xf32> to vector<128x4xf32>
    %66 = arith.addf %64, %65 : vector<128x4xf32>
    %cst_31 = arith.constant 0.000000e+00 : f32
    %67 = vector.broadcast %cst_31 : f32 to vector<128x4xf32>
    %68 = arith.maximumf %66, %67 : vector<128x4xf32>
    %69 = vector.shape_cast %68 : vector<128x4xf32> to vector<1x128x4xf32>
    %70 = arith.truncf %69 : vector<1x128x4xf32> to vector<1x128x4xbf16>
    %c0_32 = arith.constant 0 : index
    %c0_33 = arith.constant 0 : index
    %71 = vector.load %arg8[%c0_32, %c0_33] : memref<4x4xbf16, #tpu.memory_space<vmem>>, vector<4x4xbf16>
    %c0_34 = arith.constant 0 : index
    %c0_35 = arith.constant 0 : index
    %72 = vector.load %arg9[%c0_34, %c0_35] : memref<4x1xf32, #tpu.memory_space<vmem>>, vector<4x1xf32>
    %73 = vector.shape_cast %70 : vector<1x128x4xbf16> to vector<128x4xbf16>
    %cst_36 = arith.constant dense<0.000000e+00> : vector<4x128xf32>
    %74 = tpu.matmul %71, %73, %cst_36 {dimension_numbers = #tpu.dot_dimension_numbers<[1], [1], [0], [0], [0, 0, 1, 0], [], []>} : vector<4x4xbf16>, vector<128x4xbf16>, vector<4x128xf32> -> vector<4x128xf32>
    %75 = vector.broadcast %72 : vector<4x1xf32> to vector<4x128xf32>
    %76 = arith.addf %74, %75 : vector<4x128xf32>
    %c0_37 = arith.constant 0 : index
    %c0_38 = arith.constant 0 : index
    %c0_39 = arith.constant 0 : index
    %77 = vector.load %arg3[%c0_37, %c0_38, %c0_39] : memref<1x4x128xf32, #tpu.memory_space<vmem>>, vector<1x4x128xf32>
    %78 = vector.shape_cast %77 : vector<1x4x128xf32> to vector<4x128xf32>
    %79 = arith.addf %76, %78 : vector<4x128xf32>
    %cst_40 = arith.constant 0.000000e+00 : f32
    %80 = vector.broadcast %cst_40 : f32 to vector<4x128xf32>
    %81 = arith.maximumf %79, %80 : vector<4x128xf32>
    %c0_41 = arith.constant 0 : index
    %c0_42 = arith.constant 0 : index
    %c0_43 = arith.constant 0 : index
    %82 = vector.load %arg10[%c0_41, %c0_42, %c0_43] : memref<1x4x128xf32, #tpu.memory_space<vmem>>, vector<1x4x128xf32>
    %83 = vector.shape_cast %82 : vector<1x4x128xf32> to vector<4x128xf32>
    %84 = vector.shape_cast %81 : vector<4x128xf32> to vector<1x4x128xf32>
    tpu.vector_store %arg10[%c0_41, %c0_42, %c0_43], %84 {strides = array<i32>} : memref<1x4x128xf32, #tpu.memory_space<vmem>>, vector<1x4x128xf32>,
    return
  }
  func.func @transform_0(%arg0: i32, %arg1: i32) -> (i32, i32, i32, i32) {
    %c2_i32 = arith.constant 2 : i32
    %0 = arith.muli %arg1, %c2_i32 : i32
    %1 = arith.addi %0, %arg0 : i32
    %c0_i32 = arith.constant 0 : i32
    %c0_i32_0 = arith.constant 0 : i32
    %c0_i32_1 = arith.constant 0 : i32
    %c0_i32_2 = arith.constant 0 : i32
    return %1, %c0_i32, %c0_i32_0, %c0_i32_1 : i32, i32, i32, i32
  }
  func.func @transform_1(%arg0: i32, %arg1: i32) -> (i32, i32, i32) {
    %c0_i32 = arith.constant 0 : i32
    %c0_i32_0 = arith.constant 0 : i32
    return %arg0, %c0_i32, %arg1 : i32, i32, i32
  }
  func.func @transform_2(%arg0: i32, %arg1: i32) -> (i32, i32) {
    %c0_i32 = arith.constant 0 : i32
    %c0_i32_0 = arith.constant 0 : i32
    %c0_i32_1 = arith.constant 0 : i32
    return %c0_i32, %c0_i32_0 : i32, i32
  }
  func.func @transform_3(%arg0: i32, %arg1: i32) -> (i32, i32) {
    %c0_i32 = arith.constant 0 : i32
    %c0_i32_0 = arith.constant 0 : i32
    %c0_i32_1 = arith.constant 0 : i32
    return %c0_i32, %c0_i32_0 : i32, i32
  }
  func.func @transform_4(%arg0: i32, %arg1: i32) -> (i32, i32) {
    %c0_i32 = arith.constant 0 : i32
    %c0_i32_0 = arith.constant 0 : i32
    %c0_i32_1 = arith.constant 0 : i32
    return %c0_i32, %c0_i32_0 : i32, i32
  }
  func.func @transform_5(%arg0: i32, %arg1: i32) -> (i32, i32) {
    %c0_i32 = arith.constant 0 : i32
    %c0_i32_0 = arith.constant 0 : i32
    %c0_i32_1 = arith.constant 0 : i32
    return %c0_i32, %c0_i32_0 : i32, i32
  }
  func.func @transform_6(%arg0: i32, %arg1: i32) -> (i32, i32) {
    %c0_i32 = arith.constant 0 : i32
    %c0_i32_0 = arith.constant 0 : i32
    %c0_i32_1 = arith.constant 0 : i32
    return %c0_i32, %c0_i32_0 : i32, i32
  }
  func.func @transform_7(%arg0: i32, %arg1: i32) -> (i32, i32) {
    %c0_i32 = arith.constant 0 : i32
    %c0_i32_0 = arith.constant 0 : i32
    %c0_i32_1 = arith.constant 0 : i32
    return %c0_i32, %c0_i32_0 : i32, i32
  }
  func.func @transform_8(%arg0: i32, %arg1: i32) -> (i32, i32, i32) {
    %c0_i32 = arith.constant 0 : i32
    %c0_i32_0 = arith.constant 0 : i32
    return %arg0, %c0_i32, %arg1 : i32, i32, i32
  }
}

</mosaic_0001>

<llo_original>
// kernel: tpu_custom_call.1
$region0: #{tpu_custom_call.1}
  #allocation0 [shape = 'u32[]', space=smem, size = 0x4, offset = 0x4, fixed_abs, tag = 'smem constant byte address 0x4 - core index']
  #allocation1 [shape = 'u32[144,128]{1,0:T(1,128)}', space=vmem, size = 0x12000, scoped, tag = 'internal scratch']
  #allocation2 [shape = 'f32[1,10,18,4]{3,2,1,0:T(8,128)}', space=vmem, size = 0x1e000, scoped, tag = 'scratch operand']
  %s0 = inlined_call_operand.vmem [shape: bf16[4,12,18,4], index: 0, kind: input, shape index: {}]
  %s1 = inlined_call_operand.vmem [shape: f32[2,4,256], index: 1, kind: input, shape index: {}]
  %s2 = inlined_call_operand.vmem [shape: bf16[36,4], index: 2, kind: input, shape index: {}]
  %s3 = inlined_call_operand.vmem [shape: f32[1,4], index: 3, kind: input, shape index: {}]
  %s4 = inlined_call_operand.vmem [shape: bf16[36,4], index: 4, kind: input, shape index: {}]
  %s5 = inlined_call_operand.vmem [shape: f32[1,4], index: 5, kind: input, shape index: {}]
  %s6 = inlined_call_operand.vmem [shape: bf16[4,4], index: 6, kind: input, shape index: {}]
  %s7 = inlined_call_operand.vmem [shape: f32[4,1], index: 7, kind: input, shape index: {}]
  %s8 = inlined_call_operand.hbm [shape: f32[2,4,256], index: 8, kind: output, shape index: {}]
  %s9 = sld [smem:[#allocation0]]
  $region73: #{tpu_custom_call.1} parent=0
    _
  %s11 = ssub.s32 1, %s9
  %s12 = scalar_select 0, %s11, %s9
  $region1: #{tpu_custom_call.1} parent=0
    #allocation3 [shape = 'u8[4096]{0}', space=vmem, size = 0x1000, scoped, tag = 'output window, operand 0']
    #allocation4 [shape = 's32[2]{0}', space=sflag, size = 0x8, scoped, tag = 'scoped memory for tpu_custom_call.1']
    %13 = vsyncpa [#allocation4], 0
    %s14 = scalar_lea.sflag [#allocation4], 1
    %15 = vsyncpa %s14, 0
    loop: start=0, step=1, limit=6
    $region2: #{tpu_custom_call.1} parent=1 // loop_pre_header
      _
    $region3: #{tpu_custom_call.1} parent=1 // loop_header
      %s17 = sphi 0, %s21
      %p18 = scmp.ge.s32.totalorder %s17, 6
      %s24 = sphi 0, %s36
      %s25 = sphi 0, %s32
      %s26 = sphi 0, %s24
      %s27 = sphi 0, %s25
      %s28 = sphi 0, %s26
      %s29 = sphi 0, %s27
      %s43 = sphi 0, %s45
      %s46 = sphi 0, %s43
      %s47 = sphi 0, %s46
      %s63 = sphi 0, %s47
      %s71 = sphi 0, %s73
      %s74 = sphi 0, %s71
      %s75 = sphi 0, %s74
      %s91 = sphi 0, %s75
      %s95 = sphi 0, %s95
      %s97 = sphi 0, %s95
      %s98 = sphi 0, %s97
      %s112 = sphi 0, %s98
      %s116 = sphi 0, %s116
      %s118 = sphi 0, %s116
      %s119 = sphi 0, %s118
      %s133 = sphi 0, %s119
      %s137 = sphi 0, %s137
      %s139 = sphi 0, %s137
      %s140 = sphi 0, %s139
      %s154 = sphi 0, %s140
      %s158 = sphi 0, %s158
      %s160 = sphi 0, %s158
      %s161 = sphi 0, %s160
      %s175 = sphi 0, %s161
      %s179 = sphi 0, %s179
      %s181 = sphi 0, %s179
      %s182 = sphi 0, %s181
      %s196 = sphi 0, %s182
      %s200 = sphi 0, %s200
      %s202 = sphi 0, %s200
      %s203 = sphi 0, %s202
      %s217 = sphi 0, %s203
      %s225 = sphi 0, %s227
      %s228 = sphi 0, %s225
      %s229 = sphi 0, %s228
      %s245 = sphi 0, %s229
    $region4: #{tpu_custom_call.1} parent=1 // loop_header_branch
      %20 = sbr.rel (%p18) target = $region8
    $region5: #{tpu_custom_call.1} parent=1 // loop_body
      %s22 = ssub.s32 %s17, 1
      %s23 = ssub.s32 %s17, 2
      %s30 = sadd.s32 1, %s25
      %p31 = scmp.ge.s32.totalorder %s30, 2
      %s32 = scalar_select %p31, 0, %s30
      %s33 = sadd.s32 1, %s24
      %s34 = scalar_select %p31, %s33, %s24
      %p35 = scmp.ge.s32.totalorder %s34, 2
      %s36 = scalar_select %p35, 0, %s34
      %s37 = smul.u32 %s25, 2
      %s38 = sadd.s32 %s37, %s24
      %s39 = smul.u32 %s32, 2
      %s40 = sadd.s32 %s39, %s36
      %s41 = ssub.s32 %s38, %s40
      %p42 = scmp.eq.s32.totalorder %s41, 0
      %s44 = sadd.s32 %s43, 1
      %s45 = scalar_select %p42, %s43, %s44
      %p48 = pneg %p42
      %p49 = scmp.eq.s32.totalorder %s17, 3
      %p50 = por %p48, %p49
      %p51 = scmp.ne.s32.totalorder %s43, %s46
      %p52 = scmp.eq.s32.totalorder %s17, 0
      %p53 = por %p51, %p52
      %p54 = scmp.ne.s32.totalorder %s43, %s46
      %p55 = scmp.eq.s32.totalorder %s22, 3
      %p56 = por %p54, %p55
      %p57 = scmp.ne.s32.totalorder %s46, %s47
      %p58 = scmp.eq.s32.totalorder %s22, 0
      %p59 = por %p57, %p58
      %p60 = scmp.ne.s32.totalorder %s46, %s47
      %p61 = scmp.eq.s32.totalorder %s23, 3
      %p62 = por %p60, %p61
      %p64 = scmp.ne.s32.totalorder %s47, %s63
      %p65 = scmp.eq.s32.totalorder %s23, 0
      %p66 = por %p64, %p65
      %s67 = ssub.s32 %s24, %s36
      %s68 = ssub.s32 %s25, %s32
      %s69 = sor.u32 %s67, %s68
      %p70 = scmp.eq.s32.totalorder %s69, 0
      %s72 = sadd.s32 %s71, 1
      %s73 = scalar_select %p70, %s71, %s72
      %p76 = pneg %p70
      %p77 = scmp.eq.s32.totalorder %s17, 3
      %p78 = por %p76, %p77
      %p79 = scmp.ne.s32.totalorder %s71, %s74
      %p80 = scmp.eq.s32.totalorder %s17, 0
      %p81 = por %p79, %p80
      %p82 = scmp.ne.s32.totalorder %s71, %s74
      %p83 = scmp.eq.s32.totalorder %s22, 3
      %p84 = por %p82, %p83
      %p85 = scmp.ne.s32.totalorder %s74, %s75
      %p86 = scmp.eq.s32.totalorder %s22, 0
      %p87 = por %p85, %p86
      %p88 = scmp.ne.s32.totalorder %s74, %s75
      %p89 = scmp.eq.s32.totalorder %s23, 3
      %p90 = por %p88, %p89
      %p92 = scmp.ne.s32.totalorder %s75, %s91
      %p93 = scmp.eq.s32.totalorder %s23, 0
      %p94 = por %p92, %p93
      %s96 = sadd.s32 %s95, 1
      %p99 = scmp.eq.s32.totalorder %s17, 3
      %p100 = scmp.ne.s32.totalorder %s95, %s97
      %p101 = scmp.eq.s32.totalorder %s17, 0
      %p102 = por %p100, %p101
      %p103 = scmp.ne.s32.totalorder %s95, %s97
      %p104 = scmp.eq.s32.totalorder %s22, 3
      %p105 = por %p103, %p104
      %p106 = scmp.ne.s32.totalorder %s97, %s98
      %p107 = scmp.eq.s32.totalorder %s22, 0
      %p108 = por %p106, %p107
      %p109 = scmp.ne.s32.totalorder %s97, %s98
      %p110 = scmp.eq.s32.totalorder %s23, 3
      %p111 = por %p109, %p110
      %p113 = scmp.ne.s32.totalorder %s98, %s112
      %p114 = scmp.eq.s32.totalorder %s23, 0
      %p115 = por %p113, %p114
      %s117 = sadd.s32 %s116, 1
      %p120 = scmp.eq.s32.totalorder %s17, 3
      %p121 = scmp.ne.s32.totalorder %s116, %s118
      %p122 = scmp.eq.s32.totalorder %s17, 0
      %p123 = por %p121, %p122
      %p124 = scmp.ne.s32.totalorder %s116, %s118
      %p125 = scmp.eq.s32.totalorder %s22, 3
      %p126 = por %p124, %p125
      %p127 = scmp.ne.s32.totalorder %s118, %s119
      %p128 = scmp.eq.s32.totalorder %s22, 0
      %p129 = por %p127, %p128
      %p130 = scmp.ne.s32.totalorder %s118, %s119
      %p131 = scmp.eq.s32.totalorder %s23, 3
      %p132 = por %p130, %p131
      %p134 = scmp.ne.s32.totalorder %s119, %s133
      %p135 = scmp.eq.s32.totalorder %s23, 0
      %p136 = por %p134, %p135
      %s138 = sadd.s32 %s137, 1
      %p141 = scmp.eq.s32.totalorder %s17, 3
      %p142 = scmp.ne.s32.totalorder %s137, %s139
      %p143 = scmp.eq.s32.totalorder %s17, 0
      %p144 = por %p142, %p143
      %p145 = scmp.ne.s32.totalorder %s137, %s139
      %p146 = scmp.eq.s32.totalorder %s22, 3
      %p147 = por %p145, %p146
      %p148 = scmp.ne.s32.totalorder %s139, %s140
      %p149 = scmp.eq.s32.totalorder %s22, 0
      %p150 = por %p148, %p149
      %p151 = scmp.ne.s32.totalorder %s139, %s140
      %p152 = scmp.eq.s32.totalorder %s23, 3
      %p153 = por %p151, %p152
      %p155 = scmp.ne.s32.totalorder %s140, %s154
      %p156 = scmp.eq.s32.totalorder %s23, 0
      %p157 = por %p155, %p156
      %s159 = sadd.s32 %s158, 1
      %p162 = scmp.eq.s32.totalorder %s17, 3
      %p163 = scmp.ne.s32.totalorder %s158, %s160
      %p164 = scmp.eq.s32.totalorder %s17, 0
      %p165 = por %p163, %p164
      %p166 = scmp.ne.s32.totalorder %s158, %s160
      %p167 = scmp.eq.s32.totalorder %s22, 3
      %p168 = por %p166, %p167
      %p169 = scmp.ne.s32.totalorder %s160, %s161
      %p170 = scmp.eq.s32.totalorder %s22, 0
      %p171 = por %p169, %p170
      %p172 = scmp.ne.s32.totalorder %s160, %s161
      %p173 = scmp.eq.s32.totalorder %s23, 3
      %p174 = por %p172, %p173
      %p176 = scmp.ne.s32.totalorder %s161, %s175
      %p177 = scmp.eq.s32.totalorder %s23, 0
      %p178 = por %p176, %p177
      %s180 = sadd.s32 %s179, 1
      %p183 = scmp.eq.s32.totalorder %s17, 3
      %p184 = scmp.ne.s32.totalorder %s179, %s181
      %p185 = scmp.eq.s32.totalorder %s17, 0
      %p186 = por %p184, %p185
      %p187 = scmp.ne.s32.totalorder %s179, %s181
      %p188 = scmp.eq.s32.totalorder %s22, 3
      %p189 = por %p187, %p188
      %p190 = scmp.ne.s32.totalorder %s181, %s182
      %p191 = scmp.eq.s32.totalorder %s22, 0
      %p192 = por %p190, %p191
      %p193 = scmp.ne.s32.totalorder %s181, %s182
      %p194 = scmp.eq.s32.totalorder %s23, 3
      %p195 = por %p193, %p194
      %p197 = scmp.ne.s32.totalorder %s182, %s196
      %p198 = scmp.eq.s32.totalorder %s23, 0
      %p199 = por %p197, %p198
      %s201 = sadd.s32 %s200, 1
      %p204 = scmp.eq.s32.totalorder %s17, 3
      %p205 = scmp.ne.s32.totalorder %s200, %s202
      %p206 = scmp.eq.s32.totalorder %s17, 0
      %p207 = por %p205, %p206
      %p208 = scmp.ne.s32.totalorder %s200, %s202
      %p209 = scmp.eq.s32.totalorder %s22, 3
      %p210 = por %p208, %p209
      %p211 = scmp.ne.s32.totalorder %s202, %s203
      %p212 = scmp.eq.s32.totalorder %s22, 0
      %p213 = por %p211, %p212
      %p214 = scmp.ne.s32.totalorder %s202, %s203
      %p215 = scmp.eq.s32.totalorder %s23, 3
      %p216 = por %p214, %p215
      %p218 = scmp.ne.s32.totalorder %s203, %s217
      %p219 = scmp.eq.s32.totalorder %s23, 0
      %p220 = por %p218, %p219
      %s221 = ssub.s32 %s24, %s36
      %s222 = ssub.s32 %s25, %s32
      %s223 = sor.u32 %s221, %s222
      %p224 = scmp.eq.s32.totalorder %s223, 0
      %s226 = sadd.s32 %s225, 1
      %s227 = scalar_select %p224, %s225, %s226
      %p230 = pneg %p224
      %p231 = scmp.eq.s32.totalorder %s17, 3
      %p232 = por %p230, %p231
      %p233 = scmp.ne.s32.totalorder %s225, %s228
      %p234 = scmp.eq.s32.totalorder %s17, 0
      %p235 = por %p233, %p234
      %p236 = scmp.ne.s32.totalorder %s225, %s228
      %p237 = scmp.eq.s32.totalorder %s22, 3
      %p238 = por %p236, %p237
      %p239 = scmp.ne.s32.totalorder %s228, %s229
      %p240 = scmp.eq.s32.totalorder %s22, 0
      %p241 = por %p239, %p240
      %p242 = scmp.ne.s32.totalorder %s228, %s229
      %p243 = scmp.eq.s32.totalorder %s23, 3
      %p244 = por %p242, %p243
      %p246 = scmp.ne.s32.totalorder %s229, %s245
      %p247 = scmp.eq.s32.totalorder %s23, 0
      %p248 = por %p246, %p247
      %p249 = scmp.le.s32.totalorder 1, %s17
      %p250 = scmp.lt.s32.totalorder %s17, 5
      %p251 = pnand %p249, %p250
      %p252 = pneg %p251
      // Predicated region
      $region9: #{tpu_custom_call.1} parent=5 // pred_check
        _
      $region10: #{tpu_custom_call.1} parent=5 // pred_check_branch
        %254 = sbr.rel (%p251) target = $region12
      $region11: #{tpu_custom_call.1} parent=5 // pred_region
        %s255 = ssub.s32 %s17, 1
        // Predicated region
        $region13: #{tpu_custom_call.1} parent=11 // pred_check
          %p256 = pneg %p108
        $region14: #{tpu_custom_call.1} parent=11 // pred_check_branch
          %258 = sbr.rel (%p256) target = $region16
        $region15: #{tpu_custom_call.1} parent=11 // pred_region
          _
        $region16: #{tpu_custom_call.1} parent=11 // pred_fallthru
          _
        // Predicated region
        $region17: #{tpu_custom_call.1} parent=11 // pred_check
          %p259 = pneg %p129
        $region18: #{tpu_custom_call.1} parent=11 // pred_check_branch
          %261 = sbr.rel (%p259) target = $region20
        $region19: #{tpu_custom_call.1} parent=11 // pred_region
          _
        $region20: #{tpu_custom_call.1} parent=11 // pred_fallthru
          _
        // Predicated region
        $region21: #{tpu_custom_call.1} parent=11 // pred_check
          %p262 = pneg %p150
        $region22: #{tpu_custom_call.1} parent=11 // pred_check_branch
          %264 = sbr.rel (%p262) target = $region24
        $region23: #{tpu_custom_call.1} parent=11 // pred_region
          _
        $region24: #{tpu_custom_call.1} parent=11 // pred_fallthru
          _
        // Predicated region
        $region25: #{tpu_custom_call.1} parent=11 // pred_check
          %p265 = pneg %p171
        $region26: #{tpu_custom_call.1} parent=11 // pred_check_branch
          %267 = sbr.rel (%p265) target = $region28
        $region27: #{tpu_custom_call.1} parent=11 // pred_region
          _
        $region28: #{tpu_custom_call.1} parent=11 // pred_fallthru
          _
        // Predicated region
        $region29: #{tpu_custom_call.1} parent=11 // pred_check
          %p268 = pneg %p192
        $region30: #{tpu_custom_call.1} parent=11 // pred_check_branch
          %270 = sbr.rel (%p268) target = $region32
        $region31: #{tpu_custom_call.1} parent=11 // pred_region
          _
        $region32: #{tpu_custom_call.1} parent=11 // pred_fallthru
          _
        // Predicated region
        $region33: #{tpu_custom_call.1} parent=11 // pred_check
          %p271 = pneg %p213
        $region34: #{tpu_custom_call.1} parent=11 // pred_check_branch
          %273 = sbr.rel (%p271) target = $region36
        $region35: #{tpu_custom_call.1} parent=11 // pred_region
          _
        $region36: #{tpu_custom_call.1} parent=11 // pred_fallthru
          _
      $region12: #{tpu_custom_call.1} parent=5 // pred_fallthru
        _
      %p274 = scmp.lt.s32.totalorder %s17, 4
      // Predicated region
      $region37: #{tpu_custom_call.1} parent=5 // pred_check
        %p275 = pneg %p274
      $region38: #{tpu_custom_call.1} parent=5 // pred_check_branch
        %277 = sbr.rel (%p275) target = $region40
      $region39: #{tpu_custom_call.1} parent=5 // pred_region
        // Predicated region
        $region41: #{tpu_custom_call.1} parent=39 // pred_check
          %p278 = pneg %p53
        $region42: #{tpu_custom_call.1} parent=39 // pred_check_branch
          %280 = sbr.rel (%p278) target = $region44
        $region43: #{tpu_custom_call.1} parent=39 // pred_region
          %s281 = smul.u32 %s25, 2
          %s282 = sadd.s32 %s281, %s24
          %p283 = scmp.lt.s32.totalorder %s282, 3
          %s284 = scalar_select %p283, %s282, 3
          %s285 = smul.addr %s284, 36
          %s286 = smul.addr %s285, 4
          %s287 = scalar_lea.vmem %s0, %s286
          %s288 = smul.u32 %s25, 2
          %s289 = sadd.s32 %s288, %s24
        $region44: #{tpu_custom_call.1} parent=39 // pred_fallthru
          _
        // Predicated region
        $region45: #{tpu_custom_call.1} parent=39 // pred_check
          %p290 = pneg %p81
        $region46: #{tpu_custom_call.1} parent=39 // pred_check_branch
          %292 = sbr.rel (%p290) target = $region48
        $region47: #{tpu_custom_call.1} parent=39 // pred_region
          %p293 = scmp.lt.s32.totalorder %s24, 1
          %s294 = scalar_select %p293, %s24, 1
          %p295 = scmp.lt.s32.totalorder %s25, 1
          %s296 = scalar_select %p295, %s25, 1
          %s297 = smul.addr %s294, 2
          %s298 = sadd.s32 %s296, %s297
          %s299 = smul.addr %s298, 4
          %s300 = scalar_lea.vmem %s1, %s299
        $region48: #{tpu_custom_call.1} parent=39 // pred_fallthru
          _
      $region40: #{tpu_custom_call.1} parent=5 // pred_fallthru
        _
      %p301 = scmp.le.s32.totalorder 1, %s17
      %p302 = scmp.lt.s32.totalorder %s17, 5
      %p303 = pnand %p301, %p302
      %p304 = pneg %p303
      // Predicated region
      $region49: #{tpu_custom_call.1} parent=5 // pred_check
        _
      $region50: #{tpu_custom_call.1} parent=5 // pred_check_branch
        %306 = sbr.rel (%p303) target = $region52
      $region51: #{tpu_custom_call.1} parent=5 // pred_region
        %s307 = ssub.s32 %s17, 1
        %s308 = smul.u32 %s27, 2
        %s309 = sadd.s32 %s308, %s26
        %p310 = scmp.lt.s32.totalorder %s309, 3
        %s311 = scalar_select %p310, %s309, 3
        %s312 = smul.addr %s311, 36
        %s313 = smul.addr %s312, 4
        %s314 = scalar_lea.vmem %s0, %s313
        %p315 = pneg %p59
        %p316 = pneg %p56
        %p317 = scmp.lt.s32.totalorder %s26, 1
        %s318 = scalar_select %p317, %s26, 1
        %p319 = scmp.lt.s32.totalorder %s27, 1
        %s320 = scalar_select %p319, %s27, 1
        %s321 = smul.addr %s318, 2
        %s322 = sadd.s32 %s320, %s321
        %s323 = smul.addr %s322, 4
        %s324 = scalar_lea.vmem %s1, %s323
        %p325 = pneg %p87
        %p326 = pneg %p84
        %p327 = pneg %p108
        %p328 = pneg %p105
        %p329 = pneg %p129
        %p330 = pneg %p126
        %p331 = pneg %p150
        %p332 = pneg %p147
        %p333 = pneg %p171
        %p334 = pneg %p168
        %p335 = pneg %p192
        %p336 = pneg %p189
        %p337 = pneg %p213
        %p338 = pneg %p210
        %p339 = pneg %p241
        %p340 = pneg %p238
        %s341 = sand.u32 %s228, 1
        %s342 = scalar_lea.sflag [#allocation4], %s341
        %s343 = sand.u32 %s228, 1
        %s344 = smul.addr %s343, 4
        %s345 = scalar_lea.vmem [#allocation3], %s344
        %s346 = smul.u32 %s27, 2
        %s347 = sadd.s32 %s346, %s26
        %p348 = scmp.lt.s32.totalorder %s347, 3
        %s349 = scalar_select %p348, %s347, 3
        %s350 = smul.addr %s349, 36
        %s351 = smul.addr %s350, 4
        %s352 = scalar_lea.vmem %s0, %s351
        %s353 = smul.u32 %s27, 2
        %s354 = sadd.s32 %s353, %s26
        %p355 = scmp.lt.s32.totalorder %s26, 1
        %s356 = scalar_select %p355, %s26, 1
        %p357 = scmp.lt.s32.totalorder %s27, 1
        %s358 = scalar_select %p357, %s27, 1
        %s359 = smul.addr %s356, 2
        %s360 = sadd.s32 %s358, %s359
        %s361 = smul.addr %s360, 4
        %s362 = scalar_lea.vmem %s1, %s361
        %v364 = vld [vmem:[%s352] sm:$0xf]
        %v365 = vld [vmem:[%s352 + $0x4] sm:$0xf]
        %v366 = vld [vmem:[%s352 + $0x8] sm:$0x1]
        %v367 = vld [vmem:[%s352 + $0xc] sm:$0xf]
        %v368 = vld [vmem:[%s352 + $0x10] sm:$0xf]
        %v369 = vld [vmem:[%s352 + $0x14] sm:$0x1]
        %v370 = vld [vmem:[%s352 + $0x18] sm:$0xf]
        %v371 = vld [vmem:[%s352 + $0x1c] sm:$0xf]
        %v372 = vld [vmem:[%s352 + $0x20] sm:$0x1]
        %v373 = vld [vmem:[%s352 + $0x24] sm:$0xf]
        %v374 = vld [vmem:[%s352 + $0x28] sm:$0xf]
        %v375 = vld [vmem:[%s352 + $0x2c] sm:$0x1]
        %v376 = vld [vmem:[%s352 + $0x30] sm:$0xf]
        %v377 = vld [vmem:[%s352 + $0x34] sm:$0xf]
        %v378 = vld [vmem:[%s352 + $0x38] sm:$0x1]
        %v379 = vld [vmem:[%s352 + $0x3c] sm:$0xf]
        %v380 = vld [vmem:[%s352 + $0x40] sm:$0xf]
        %v381 = vld [vmem:[%s352 + $0x44] sm:$0x1]
        %v382 = vld [vmem:[%s352 + $0x48] sm:$0xf]
        %v383 = vld [vmem:[%s352 + $0x4c] sm:$0xf]
        %v384 = vld [vmem:[%s352 + $0x50] sm:$0x1]
        %v385 = vld [vmem:[%s352 + $0x54] sm:$0xf]
        %v386 = vld [vmem:[%s352 + $0x58] sm:$0xf]
        %v387 = vld [vmem:[%s352 + $0x5c] sm:$0x1]
        %v388 = vld [vmem:[%s352 + $0x60] sm:$0xf]
        %v389 = vld [vmem:[%s352 + $0x64] sm:$0xf]
        %v390 = vld [vmem:[%s352 + $0x68] sm:$0x1]
        %v391 = vld [vmem:[%s352 + $0x6c] sm:$0xf]
        %v392 = vld [vmem:[%s352 + $0x70] sm:$0xf]
        %v393 = vld [vmem:[%s352 + $0x74] sm:$0x1]
        %v394 = vld [vmem:[%s352 + $0x78] sm:$0xf]
        %v395 = vld [vmem:[%s352 + $0x7c] sm:$0xf]
        %v396 = vld [vmem:[%s352 + $0x80] sm:$0x1]
        %v397 = vld [vmem:[%s352 + $0x84] sm:$0xf]
        %v398 = vld [vmem:[%s352 + $0x88] sm:$0xf]
        %v399 = vld [vmem:[%s352 + $0x8c] sm:$0x1]
        %v400 = vunpack.c.l.bf16 %v364
        %v401 = vunpack.c.l.bf16 %v365
        %v402 = vunpack.c.l.bf16 %v366
        %v403 = vunpack.c.l.bf16 %v367
        %v404 = vunpack.c.l.bf16 %v368
        %v405 = vunpack.c.l.bf16 %v369
        %v406 = vunpack.c.l.bf16 %v370
        %v407 = vunpack.c.l.bf16 %v371
        %v408 = vunpack.c.l.bf16 %v372
        %v409 = vunpack.c.l.bf16 %v373
        %v410 = vunpack.c.l.bf16 %v374
        %v411 = vunpack.c.l.bf16 %v375
        %v412 = vunpack.c.l.bf16 %v376
        %v413 = vunpack.c.l.bf16 %v377
        %v414 = vunpack.c.l.bf16 %v378
        %v415 = vunpack.c.l.bf16 %v379
        %v416 = vunpack.c.l.bf16 %v380
        %v417 = vunpack.c.l.bf16 %v381
        %v418 = vunpack.c.l.bf16 %v382
        %v419 = vunpack.c.l.bf16 %v383
        %v420 = vunpack.c.l.bf16 %v384
        %v421 = vunpack.c.l.bf16 %v385
        %v422 = vunpack.c.l.bf16 %v386
        %v423 = vunpack.c.l.bf16 %v387
        %v424 = vunpack.c.l.bf16 %v388
        %v425 = vunpack.c.l.bf16 %v389
        %v426 = vunpack.c.l.bf16 %v390
        %v427 = vunpack.c.l.bf16 %v391
        %v428 = vunpack.c.l.bf16 %v392
        %v429 = vunpack.c.l.bf16 %v393
        %v430 = vunpack.c.l.bf16 %v394
        %v431 = vunpack.c.l.bf16 %v395
        %v432 = vunpack.c.l.bf16 %v396
        %v433 = vunpack.c.l.bf16 %v397
        %v434 = vunpack.c.l.bf16 %v398
        %v435 = vunpack.c.l.bf16 %v399
        %v436 = vld [vmem:[%s3] sm:$0x1]
        %vm467 = vcmask 1046528
        %v468 = vrot.slane %v400, 1
        %v469 = vrot.slane %v401, 1
        %v470 = vsel %vm467, %v468, %v469
        %v471 = vrot.slane %v402, 1
        %v472 = vsel %vm467, %v469, %v471
        %v473 = vrot.slane %v403, 1
        %v474 = vrot.slane %v404, 1
        %v475 = vsel %vm467, %v473, %v474
        %v476 = vrot.slane %v405, 1
        %v477 = vsel %vm467, %v474, %v476
        %v478 = vrot.slane %v406, 1
        %v479 = vrot.slane %v407, 1
        %v480 = vsel %vm467, %v478, %v479
        %v481 = vrot.slane %v408, 1
        %v482 = vsel %vm467, %v479, %v481
        %v483 = vrot.slane %v409, 1
        %v484 = vrot.slane %v410, 1
        %v485 = vsel %vm467, %v483, %v484
        %v486 = vrot.slane %v411, 1
        %v487 = vsel %vm467, %v484, %v486
        %v488 = vrot.slane %v412, 1
        %v489 = vrot.slane %v413, 1
        %v490 = vsel %vm467, %v488, %v489
        %v491 = vrot.slane %v414, 1
        %v492 = vsel %vm467, %v489, %v491
        %v493 = vrot.slane %v415, 1
        %v494 = vrot.slane %v416, 1
        %v495 = vsel %vm467, %v493, %v494
        %v496 = vrot.slane %v417, 1
        %v497 = vsel %vm467, %v494, %v496
        %v498 = vrot.slane %v418, 1
        %v499 = vrot.slane %v419, 1
        %v500 = vsel %vm467, %v498, %v499
        %v501 = vrot.slane %v420, 1
        %v502 = vsel %vm467, %v499, %v501
        %v503 = vrot.slane %v421, 1
        %v504 = vrot.slane %v422, 1
        %v505 = vsel %vm467, %v503, %v504
        %v506 = vrot.slane %v423, 1
        %v507 = vsel %vm467, %v504, %v506
        %v508 = vrot.slane %v424, 1
        %v509 = vrot.slane %v425, 1
        %v510 = vsel %vm467, %v508, %v509
        %v511 = vrot.slane %v426, 1
        %v512 = vsel %vm467, %v509, %v511
        %v513 = vrot.slane %v427, 1
        %v514 = vrot.slane %v428, 1
        %v515 = vsel %vm467, %v513, %v514
        %v516 = vrot.slane %v429, 1
        %v517 = vsel %vm467, %v514, %v516
        %vm518 = vcmask 1045504
        %v519 = vrot.slane %v400, 2
        %v520 = vrot.slane %v401, 2
        %v521 = vsel %vm518, %v519, %v520
        %v522 = vrot.slane %v402, 2
        %v523 = vsel %vm518, %v520, %v522
        %v524 = vrot.slane %v403, 2
        %v525 = vrot.slane %v404, 2
        %v526 = vsel %vm518, %v524, %v525
        %v527 = vrot.slane %v405, 2
        %v528 = vsel %vm518, %v525, %v527
        %v529 = vrot.slane %v406, 2
        %v530 = vrot.slane %v407, 2
        %v531 = vsel %vm518, %v529, %v530
        %v532 = vrot.slane %v408, 2
        %v533 = vsel %vm518, %v530, %v532
        %v534 = vrot.slane %v409, 2
        %v535 = vrot.slane %v410, 2
        %v536 = vsel %vm518, %v534, %v535
        %v537 = vrot.slane %v411, 2
        %v538 = vsel %vm518, %v535, %v537
        %v539 = vrot.slane %v412, 2
        %v540 = vrot.slane %v413, 2
        %v541 = vsel %vm518, %v539, %v540
        %v542 = vrot.slane %v414, 2
        %v543 = vsel %vm518, %v540, %v542
        %v544 = vrot.slane %v415, 2
        %v545 = vrot.slane %v416, 2
        %v546 = vsel %vm518, %v544, %v545
        %v547 = vrot.slane %v417, 2
        %v548 = vsel %vm518, %v545, %v547
        %v549 = vrot.slane %v418, 2
        %v550 = vrot.slane %v419, 2
        %v551 = vsel %vm518, %v549, %v550
        %v552 = vrot.slane %v420, 2
        %v553 = vsel %vm518, %v550, %v552
        %v554 = vrot.slane %v421, 2
        %v555 = vrot.slane %v422, 2
        %v556 = vsel %vm518, %v554, %v555
        %v557 = vrot.slane %v423, 2
        %v558 = vsel %vm518, %v555, %v557
        %v559 = vrot.slane %v424, 2
        %v560 = vrot.slane %v425, 2
        %v561 = vsel %vm518, %v559, %v560
        %v562 = vrot.slane %v426, 2
        %v563 = vsel %vm518, %v560, %v562
        %v564 = vrot.slane %v427, 2
        %v565 = vrot.slane %v428, 2
        %v566 = vsel %vm518, %v564, %v565
        %v567 = vrot.slane %v429, 2
        %v568 = vsel %vm518, %v565, %v567
        %v572 = vrot.slane %v430, 1
        %v573 = vrot.slane %v431, 1
        %v574 = vsel %vm467, %v572, %v573
        %v575 = vrot.slane %v432, 1
        %v576 = vsel %vm467, %v573, %v575
        %v577 = vrot.slane %v430, 2
        %v578 = vrot.slane %v431, 2
        %v579 = vsel %vm518, %v577, %v578
        %v580 = vrot.slane %v432, 2
        %v581 = vsel %vm518, %v578, %v580
        %v585 = vrot.slane %v433, 1
        %v586 = vrot.slane %v434, 1
        %v587 = vsel %vm467, %v585, %v586
        %v588 = vrot.slane %v435, 1
        %v589 = vsel %vm467, %v586, %v588
        %v590 = vrot.slane %v433, 2
        %v591 = vrot.slane %v434, 2
        %v592 = vsel %vm518, %v590, %v591
        %v593 = vrot.slane %v435, 2
        %v594 = vsel %vm518, %v591, %v593
        %595 = vrot.lane.b32.xlu0 %v470, 4
        %v596 = vpop.permute.xlu0 %595
        %597 = vrot.lane.b32.xlu0 %v472, 4
        %v598 = vpop.permute.xlu0 %597
        %599 = vrot.lane.b32.xlu0 %v475, 4
        %v600 = vpop.permute.xlu0 %599
        %601 = vrot.lane.b32.xlu0 %v477, 4
        %v602 = vpop.permute.xlu0 %601
        %603 = vrot.lane.b32.xlu0 %v480, 4
        %v604 = vpop.permute.xlu0 %603
        %605 = vrot.lane.b32.xlu0 %v482, 4
        %v606 = vpop.permute.xlu0 %605
        %607 = vrot.lane.b32.xlu0 %v485, 4
        %v608 = vpop.permute.xlu0 %607
        %609 = vrot.lane.b32.xlu0 %v487, 4
        %v610 = vpop.permute.xlu0 %609
        %611 = vrot.lane.b32.xlu0 %v490, 4
        %v612 = vpop.permute.xlu0 %611
        %613 = vrot.lane.b32.xlu0 %v492, 4
        %v614 = vpop.permute.xlu0 %613
        %615 = vrot.lane.b32.xlu0 %v495, 4
        %v616 = vpop.permute.xlu0 %615
        %617 = vrot.lane.b32.xlu0 %v497, 4
        %v618 = vpop.permute.xlu0 %617
        %619 = vrot.lane.b32.xlu0 %v500, 4
        %v620 = vpop.permute.xlu0 %619
        %621 = vrot.lane.b32.xlu0 %v502, 4
        %v622 = vpop.permute.xlu0 %621
        %623 = vrot.lane.b32.xlu0 %v505, 4
        %v624 = vpop.permute.xlu0 %623
        %625 = vrot.lane.b32.xlu0 %v507, 4
        %v626 = vpop.permute.xlu0 %625
        %627 = vrot.lane.b32.xlu0 %v510, 4
        %v628 = vpop.permute.xlu0 %627
        %629 = vrot.lane.b32.xlu0 %v512, 4
        %v630 = vpop.permute.xlu0 %629
        %631 = vrot.lane.b32.xlu0 %v515, 4
        %v632 = vpop.permute.xlu0 %631
        %633 = vrot.lane.b32.xlu0 %v517, 4
        %v634 = vpop.permute.xlu0 %633
        %655 = vrot.lane.b32.xlu0 %v521, 8
        %v656 = vpop.permute.xlu0 %655
        %657 = vrot.lane.b32.xlu0 %v523, 8
        %v658 = vpop.permute.xlu0 %657
        %659 = vrot.lane.b32.xlu0 %v526, 8
        %v660 = vpop.permute.xlu0 %659
        %661 = vrot.lane.b32.xlu0 %v528, 8
        %v662 = vpop.permute.xlu0 %661
        %663 = vrot.lane.b32.xlu0 %v531, 8
        %v664 = vpop.permute.xlu0 %663
        %665 = vrot.lane.b32.xlu0 %v533, 8
        %v666 = vpop.permute.xlu0 %665
        %667 = vrot.lane.b32.xlu0 %v536, 8
        %v668 = vpop.permute.xlu0 %667
        %669 = vrot.lane.b32.xlu0 %v538, 8
        %v670 = vpop.permute.xlu0 %669
        %671 = vrot.lane.b32.xlu0 %v541, 8
        %v672 = vpop.permute.xlu0 %671
        %673 = vrot.lane.b32.xlu0 %v543, 8
        %v674 = vpop.permute.xlu0 %673
        %675 = vrot.lane.b32.xlu0 %v546, 8
        %v676 = vpop.permute.xlu0 %675
        %677 = vrot.lane.b32.xlu0 %v548, 8
        %v678 = vpop.permute.xlu0 %677
        %679 = vrot.lane.b32.xlu0 %v551, 8
        %v680 = vpop.permute.xlu0 %679
        %681 = vrot.lane.b32.xlu0 %v553, 8
        %v682 = vpop.permute.xlu0 %681
        %683 = vrot.lane.b32.xlu0 %v556, 8
        %v684 = vpop.permute.xlu0 %683
        %685 = vrot.lane.b32.xlu0 %v558, 8
        %v686 = vpop.permute.xlu0 %685
        %687 = vrot.lane.b32.xlu0 %v561, 8
        %v688 = vpop.permute.xlu0 %687
        %689 = vrot.lane.b32.xlu0 %v563, 8
        %v690 = vpop.permute.xlu0 %689
        %691 = vrot.lane.b32.xlu0 %v566, 8
        %v692 = vpop.permute.xlu0 %691
        %693 = vrot.lane.b32.xlu0 %v568, 8
        %v694 = vpop.permute.xlu0 %693
        %715 = vrot.lane.b32.xlu0 %v403, 12
        %v716 = vpop.permute.xlu0 %715
        %717 = vrot.lane.b32.xlu0 %v404, 12
        %v718 = vpop.permute.xlu0 %717
        %719 = vrot.lane.b32.xlu0 %v406, 12
        %v720 = vpop.permute.xlu0 %719
        %721 = vrot.lane.b32.xlu0 %v407, 12
        %v722 = vpop.permute.xlu0 %721
        %723 = vrot.lane.b32.xlu0 %v409, 12
        %v724 = vpop.permute.xlu0 %723
        %725 = vrot.lane.b32.xlu0 %v410, 12
        %v726 = vpop.permute.xlu0 %725
        %727 = vrot.lane.b32.xlu0 %v412, 12
        %v728 = vpop.permute.xlu0 %727
        %729 = vrot.lane.b32.xlu0 %v413, 12
        %v730 = vpop.permute.xlu0 %729
        %731 = vrot.lane.b32.xlu0 %v415, 12
        %v732 = vpop.permute.xlu0 %731
        %733 = vrot.lane.b32.xlu0 %v416, 12
        %v734 = vpop.permute.xlu0 %733
        %735 = vrot.lane.b32.xlu0 %v418, 12
        %v736 = vpop.permute.xlu0 %735
        %737 = vrot.lane.b32.xlu0 %v419, 12
        %v738 = vpop.permute.xlu0 %737
        %739 = vrot.lane.b32.xlu0 %v421, 12
        %v740 = vpop.permute.xlu0 %739
        %741 = vrot.lane.b32.xlu0 %v422, 12
        %v742 = vpop.permute.xlu0 %741
        %743 = vrot.lane.b32.xlu0 %v424, 12
        %v744 = vpop.permute.xlu0 %743
        %745 = vrot.lane.b32.xlu0 %v425, 12
        %v746 = vpop.permute.xlu0 %745
        %747 = vrot.lane.b32.xlu0 %v427, 12
        %v748 = vpop.permute.xlu0 %747
        %749 = vrot.lane.b32.xlu0 %v428, 12
        %v750 = vpop.permute.xlu0 %749
        %751 = vrot.lane.b32.xlu0 %v430, 12
        %v752 = vpop.permute.xlu0 %751
        %753 = vrot.lane.b32.xlu0 %v431, 12
        %v754 = vpop.permute.xlu0 %753
        %775 = vrot.lane.b32.xlu0 %v475, 16
        %v776 = vpop.permute.xlu0 %775
        %777 = vrot.lane.b32.xlu0 %v477, 16
        %v778 = vpop.permute.xlu0 %777
        %779 = vrot.lane.b32.xlu0 %v480, 16
        %v780 = vpop.permute.xlu0 %779
        %781 = vrot.lane.b32.xlu0 %v482, 16
        %v782 = vpop.permute.xlu0 %781
        %783 = vrot.lane.b32.xlu0 %v485, 16
        %v784 = vpop.permute.xlu0 %783
        %785 = vrot.lane.b32.xlu0 %v487, 16
        %v786 = vpop.permute.xlu0 %785
        %787 = vrot.lane.b32.xlu0 %v490, 16
        %v788 = vpop.permute.xlu0 %787
        %789 = vrot.lane.b32.xlu0 %v492, 16
        %v790 = vpop.permute.xlu0 %789
        %791 = vrot.lane.b32.xlu0 %v495, 16
        %v792 = vpop.permute.xlu0 %791
        %793 = vrot.lane.b32.xlu0 %v497, 16
        %v794 = vpop.permute.xlu0 %793
        %795 = vrot.lane.b32.xlu0 %v500, 16
        %v796 = vpop.permute.xlu0 %795
        %797 = vrot.lane.b32.xlu0 %v502, 16
        %v798 = vpop.permute.xlu0 %797
        %799 = vrot.lane.b32.xlu0 %v505, 16
        %v800 = vpop.permute.xlu0 %799
        %801 = vrot.lane.b32.xlu0 %v507, 16
        %v802 = vpop.permute.xlu0 %801
        %803 = vrot.lane.b32.xlu0 %v510, 16
        %v804 = vpop.permute.xlu0 %803
        %805 = vrot.lane.b32.xlu0 %v512, 16
        %v806 = vpop.permute.xlu0 %805
        %807 = vrot.lane.b32.xlu0 %v515, 16
        %v808 = vpop.permute.xlu0 %807
        %809 = vrot.lane.b32.xlu0 %v517, 16
        %v810 = vpop.permute.xlu0 %809
        %811 = vrot.lane.b32.xlu0 %v574, 16
        %v812 = vpop.permute.xlu0 %811
        %813 = vrot.lane.b32.xlu0 %v576, 16
        %v814 = vpop.permute.xlu0 %813
        %835 = vrot.lane.b32.xlu0 %v526, 20
        %v836 = vpop.permute.xlu0 %835
        %837 = vrot.lane.b32.xlu0 %v528, 20
        %v838 = vpop.permute.xlu0 %837
        %839 = vrot.lane.b32.xlu0 %v531, 20
        %v840 = vpop.permute.xlu0 %839
        %841 = vrot.lane.b32.xlu0 %v533, 20
        %v842 = vpop.permute.xlu0 %841
        %843 = vrot.lane.b32.xlu0 %v536, 20
        %v844 = vpop.permute.xlu0 %843
        %845 = vrot.lane.b32.xlu0 %v538, 20
        %v846 = vpop.permute.xlu0 %845
        %847 = vrot.lane.b32.xlu0 %v541, 20
        %v848 = vpop.permute.xlu0 %847
        %849 = vrot.lane.b32.xlu0 %v543, 20
        %v850 = vpop.permute.xlu0 %849
        %851 = vrot.lane.b32.xlu0 %v546, 20
        %v852 = vpop.permute.xlu0 %851
        %853 = vrot.lane.b32.xlu0 %v548, 20
        %v854 = vpop.permute.xlu0 %853
        %855 = vrot.lane.b32.xlu0 %v551, 20
        %v856 = vpop.permute.xlu0 %855
        %857 = vrot.lane.b32.xlu0 %v553, 20
        %v858 = vpop.permute.xlu0 %857
        %859 = vrot.lane.b32.xlu0 %v556, 20
        %v860 = vpop.permute.xlu0 %859
        %861 = vrot.lane.b32.xlu0 %v558, 20
        %v862 = vpop.permute.xlu0 %861
        %863 = vrot.lane.b32.xlu0 %v561, 20
        %v864 = vpop.permute.xlu0 %863
        %865 = vrot.lane.b32.xlu0 %v563, 20
        %v866 = vpop.permute.xlu0 %865
        %867 = vrot.lane.b32.xlu0 %v566, 20
        %v868 = vpop.permute.xlu0 %867
        %869 = vrot.lane.b32.xlu0 %v568, 20
        %v870 = vpop.permute.xlu0 %869
        %871 = vrot.lane.b32.xlu0 %v579, 20
        %v872 = vpop.permute.xlu0 %871
        %873 = vrot.lane.b32.xlu0 %v581, 20
        %v874 = vpop.permute.xlu0 %873
        %895 = vrot.lane.b32.xlu0 %v406, 24
        %v896 = vpop.permute.xlu0 %895
        %897 = vrot.lane.b32.xlu0 %v407, 24
        %v898 = vpop.permute.xlu0 %897
        %899 = vrot.lane.b32.xlu0 %v409, 24
        %v900 = vpop.permute.xlu0 %899
        %901 = vrot.lane.b32.xlu0 %v410, 24
        %v902 = vpop.permute.xlu0 %901
        %903 = vrot.lane.b32.xlu0 %v412, 24
        %v904 = vpop.permute.xlu0 %903
        %905 = vrot.lane.b32.xlu0 %v413, 24
        %v906 = vpop.permute.xlu0 %905
        %907 = vrot.lane.b32.xlu0 %v415, 24
        %v908 = vpop.permute.xlu0 %907
        %909 = vrot.lane.b32.xlu0 %v416, 24
        %v910 = vpop.permute.xlu0 %909
        %911 = vrot.lane.b32.xlu0 %v418, 24
        %v912 = vpop.permute.xlu0 %911
        %913 = vrot.lane.b32.xlu0 %v419, 24
        %v914 = vpop.permute.xlu0 %913
        %915 = vrot.lane.b32.xlu0 %v421, 24
        %v916 = vpop.permute.xlu0 %915
        %917 = vrot.lane.b32.xlu0 %v422, 24
        %v918 = vpop.permute.xlu0 %917
        %919 = vrot.lane.b32.xlu0 %v424, 24
        %v920 = vpop.permute.xlu0 %919
        %921 = vrot.lane.b32.xlu0 %v425, 24
        %v922 = vpop.permute.xlu0 %921
        %923 = vrot.lane.b32.xlu0 %v427, 24
        %v924 = vpop.permute.xlu0 %923
        %925 = vrot.lane.b32.xlu0 %v428, 24
        %v926 = vpop.permute.xlu0 %925
        %927 = vrot.lane.b32.xlu0 %v430, 24
        %v928 = vpop.permute.xlu0 %927
        %929 = vrot.lane.b32.xlu0 %v431, 24
        %v930 = vpop.permute.xlu0 %929
        %931 = vrot.lane.b32.xlu0 %v433, 24
        %v932 = vpop.permute.xlu0 %931
        %933 = vrot.lane.b32.xlu0 %v434, 24
        %v934 = vpop.permute.xlu0 %933
        %955 = vrot.lane.b32.xlu0 %v480, 28
        %v956 = vpop.permute.xlu0 %955
        %957 = vrot.lane.b32.xlu0 %v482, 28
        %v958 = vpop.permute.xlu0 %957
        %959 = vrot.lane.b32.xlu0 %v485, 28
        %v960 = vpop.permute.xlu0 %959
        %961 = vrot.lane.b32.xlu0 %v487, 28
        %v962 = vpop.permute.xlu0 %961
        %963 = vrot.lane.b32.xlu0 %v490, 28
        %v964 = vpop.permute.xlu0 %963
        %965 = vrot.lane.b32.xlu0 %v492, 28
        %v966 = vpop.permute.xlu0 %965
        %967 = vrot.lane.b32.xlu0 %v495, 28
        %v968 = vpop.permute.xlu0 %967
        %969 = vrot.lane.b32.xlu0 %v497, 28
        %v970 = vpop.permute.xlu0 %969
        %971 = vrot.lane.b32.xlu0 %v500, 28
        %v972 = vpop.permute.xlu0 %971
        %973 = vrot.lane.b32.xlu0 %v502, 28
        %v974 = vpop.permute.xlu0 %973
        %975 = vrot.lane.b32.xlu0 %v505, 28
        %v976 = vpop.permute.xlu0 %975
        %977 = vrot.lane.b32.xlu0 %v507, 28
        %v978 = vpop.permute.xlu0 %977
        %979 = vrot.lane.b32.xlu0 %v510, 28
        %v980 = vpop.permute.xlu0 %979
        %981 = vrot.lane.b32.xlu0 %v512, 28
        %v982 = vpop.permute.xlu0 %981
        %983 = vrot.lane.b32.xlu0 %v515, 28
        %v984 = vpop.permute.xlu0 %983
        %985 = vrot.lane.b32.xlu0 %v517, 28
        %v986 = vpop.permute.xlu0 %985
        %987 = vrot.lane.b32.xlu0 %v574, 28
        %v988 = vpop.permute.xlu0 %987
        %989 = vrot.lane.b32.xlu0 %v576, 28
        %v990 = vpop.permute.xlu0 %989
        %991 = vrot.lane.b32.xlu0 %v587, 28
        %v992 = vpop.permute.xlu0 %991
        %993 = vrot.lane.b32.xlu0 %v589, 28
        %v994 = vpop.permute.xlu0 %993
        %1015 = vrot.lane.b32.xlu0 %v531, 32
        %v1016 = vpop.permute.xlu0 %1015
        %1017 = vrot.lane.b32.xlu0 %v533, 32
        %v1018 = vpop.permute.xlu0 %1017
        %1019 = vrot.lane.b32.xlu0 %v536, 32
        %v1020 = vpop.permute.xlu0 %1019
        %1021 = vrot.lane.b32.xlu0 %v538, 32
        %v1022 = vpop.permute.xlu0 %1021
        %1023 = vrot.lane.b32.xlu0 %v541, 32
        %v1024 = vpop.permute.xlu0 %1023
        %1025 = vrot.lane.b32.xlu0 %v543, 32
        %v1026 = vpop.permute.xlu0 %1025
        %1027 = vrot.lane.b32.xlu0 %v546, 32
        %v1028 = vpop.permute.xlu0 %1027
        %1029 = vrot.lane.b32.xlu0 %v548, 32
        %v1030 = vpop.permute.xlu0 %1029
        %1031 = vrot.lane.b32.xlu0 %v551, 32
        %v1032 = vpop.permute.xlu0 %1031
        %1033 = vrot.lane.b32.xlu0 %v553, 32
        %v1034 = vpop.permute.xlu0 %1033
        %1035 = vrot.lane.b32.xlu0 %v556, 32
        %v1036 = vpop.permute.xlu0 %1035
        %1037 = vrot.lane.b32.xlu0 %v558, 32
        %v1038 = vpop.permute.xlu0 %1037
        %1039 = vrot.lane.b32.xlu0 %v561, 32
        %v1040 = vpop.permute.xlu0 %1039
        %1041 = vrot.lane.b32.xlu0 %v563, 32
        %v1042 = vpop.permute.xlu0 %1041
        %1043 = vrot.lane.b32.xlu0 %v566, 32
        %v1044 = vpop.permute.xlu0 %1043
        %1045 = vrot.lane.b32.xlu0 %v568, 32
        %v1046 = vpop.permute.xlu0 %1045
        %1047 = vrot.lane.b32.xlu0 %v579, 32
        %v1048 = vpop.permute.xlu0 %1047
        %1049 = vrot.lane.b32.xlu0 %v581, 32
        %v1050 = vpop.permute.xlu0 %1049
        %1051 = vrot.lane.b32.xlu0 %v592, 32
        %v1052 = vpop.permute.xlu0 %1051
        %1053 = vrot.lane.b32.xlu0 %v594, 32
        %v1054 = vpop.permute.xlu0 %1053
        %vm1075 = vcmask 31744
        %v1076 = vsel %vm1075, %v400, %v596
        %v1077 = vsel %vm1075, %v401, %v598
        %v1078 = vsel %vm1075, %v403, %v600
        %v1079 = vsel %vm1075, %v404, %v602
        %v1080 = vsel %vm1075, %v406, %v604
        %v1081 = vsel %vm1075, %v407, %v606
        %v1082 = vsel %vm1075, %v409, %v608
        %v1083 = vsel %vm1075, %v410, %v610
        %v1084 = vsel %vm1075, %v412, %v612
        %v1085 = vsel %vm1075, %v413, %v614
        %v1086 = vsel %vm1075, %v415, %v616
        %v1087 = vsel %vm1075, %v416, %v618
        %v1088 = vsel %vm1075, %v418, %v620
        %v1089 = vsel %vm1075, %v419, %v622
        %v1090 = vsel %vm1075, %v421, %v624
        %v1091 = vsel %vm1075, %v422, %v626
        %v1092 = vsel %vm1075, %v424, %v628
        %v1093 = vsel %vm1075, %v425, %v630
        %v1094 = vsel %vm1075, %v427, %v632
        %v1095 = vsel %vm1075, %v428, %v634
        %vm1096 = vcmask 64512
        %v1097 = vsel %vm1096, %v1076, %v656
        %v1098 = vsel %vm1096, %v1077, %v658
        %v1099 = vsel %vm1096, %v1078, %v660
        %v1100 = vsel %vm1096, %v1079, %v662
        %v1101 = vsel %vm1096, %v1080, %v664
        %v1102 = vsel %vm1096, %v1081, %v666
        %v1103 = vsel %vm1096, %v1082, %v668
        %v1104 = vsel %vm1096, %v1083, %v670
        %v1105 = vsel %vm1096, %v1084, %v672
        %v1106 = vsel %vm1096, %v1085, %v674
        %v1107 = vsel %vm1096, %v1086, %v676
        %v1108 = vsel %vm1096, %v1087, %v678
        %v1109 = vsel %vm1096, %v1088, %v680
        %v1110 = vsel %vm1096, %v1089, %v682
        %v1111 = vsel %vm1096, %v1090, %v684
        %v1112 = vsel %vm1096, %v1091, %v686
        %v1113 = vsel %vm1096, %v1092, %v688
        %v1114 = vsel %vm1096, %v1093, %v690
        %v1115 = vsel %vm1096, %v1094, %v692
        %v1116 = vsel %vm1096, %v1095, %v694
        %vm1117 = vcmask 97280
        %v1118 = vsel %vm1117, %v1097, %v716
        %v1119 = vsel %vm1117, %v1098, %v718
        %v1120 = vsel %vm1117, %v1099, %v720
        %v1121 = vsel %vm1117, %v1100, %v722
        %v1122 = vsel %vm1117, %v1101, %v724
        %v1123 = vsel %vm1117, %v1102, %v726
        %v1124 = vsel %vm1117, %v1103, %v728
        %v1125 = vsel %vm1117, %v1104, %v730
        %v1126 = vsel %vm1117, %v1105, %v732
        %v1127 = vsel %vm1117, %v1106, %v734
        %v1128 = vsel %vm1117, %v1107, %v736
        %v1129 = vsel %vm1117, %v1108, %v738
        %v1130 = vsel %vm1117, %v1109, %v740
        %v1131 = vsel %vm1117, %v1110, %v742
        %v1132 = vsel %vm1117, %v1111, %v744
        %v1133 = vsel %vm1117, %v1112, %v746
        %v1134 = vsel %vm1117, %v1113, %v748
        %v1135 = vsel %vm1117, %v1114, %v750
        %v1136 = vsel %vm1117, %v1115, %v752
        %v1137 = vsel %vm1117, %v1116, %v754
        %vm1138 = vcmask 130048
        %v1139 = vsel %vm1138, %v1118, %v776
        %v1140 = vsel %vm1138, %v1119, %v778
        %v1141 = vsel %vm1138, %v1120, %v780
        %v1142 = vsel %vm1138, %v1121, %v782
        %v1143 = vsel %vm1138, %v1122, %v784
        %v1144 = vsel %vm1138, %v1123, %v786
        %v1145 = vsel %vm1138, %v1124, %v788
        %v1146 = vsel %vm1138, %v1125, %v790
        %v1147 = vsel %vm1138, %v1126, %v792
        %v1148 = vsel %vm1138, %v1127, %v794
        %v1149 = vsel %vm1138, %v1128, %v796
        %v1150 = vsel %vm1138, %v1129, %v798
        %v1151 = vsel %vm1138, %v1130, %v800
        %v1152 = vsel %vm1138, %v1131, %v802
        %v1153 = vsel %vm1138, %v1132, %v804
        %v1154 = vsel %vm1138, %v1133, %v806
        %v1155 = vsel %vm1138, %v1134, %v808
        %v1156 = vsel %vm1138, %v1135, %v810
        %v1157 = vsel %vm1138, %v1136, %v812
        %v1158 = vsel %vm1138, %v1137, %v814
        %vm1159 = vcmask 162816
        %v1160 = vsel %vm1159, %v1139, %v836
        %v1161 = vsel %vm1159, %v1140, %v838
        %v1162 = vsel %vm1159, %v1141, %v840
        %v1163 = vsel %vm1159, %v1142, %v842
        %v1164 = vsel %vm1159, %v1143, %v844
        %v1165 = vsel %vm1159, %v1144, %v846
        %v1166 = vsel %vm1159, %v1145, %v848
        %v1167 = vsel %vm1159, %v1146, %v850
        %v1168 = vsel %vm1159, %v1147, %v852
        %v1169 = vsel %vm1159, %v1148, %v854
        %v1170 = vsel %vm1159, %v1149, %v856
        %v1171 = vsel %vm1159, %v1150, %v858
        %v1172 = vsel %vm1159, %v1151, %v860
        %v1173 = vsel %vm1159, %v1152, %v862
        %v1174 = vsel %vm1159, %v1153, %v864
        %v1175 = vsel %vm1159, %v1154, %v866
        %v1176 = vsel %vm1159, %v1155, %v868
        %v1177 = vsel %vm1159, %v1156, %v870
        %v1178 = vsel %vm1159, %v1157, %v872
        %v1179 = vsel %vm1159, %v1158, %v874
        %vm1180 = vcmask 195584
        %v1181 = vsel %vm1180, %v1160, %v896
        %v1182 = vsel %vm1180, %v1161, %v898
        %v1183 = vsel %vm1180, %v1162, %v900
        %v1184 = vsel %vm1180, %v1163, %v902
        %v1185 = vsel %vm1180, %v1164, %v904
        %v1186 = vsel %vm1180, %v1165, %v906
        %v1187 = vsel %vm1180, %v1166, %v908
        %v1188 = vsel %vm1180, %v1167, %v910
        %v1189 = vsel %vm1180, %v1168, %v912
        %v1190 = vsel %vm1180, %v1169, %v914
        %v1191 = vsel %vm1180, %v1170, %v916
        %v1192 = vsel %vm1180, %v1171, %v918
        %v1193 = vsel %vm1180, %v1172, %v920
        %v1194 = vsel %vm1180, %v1173, %v922
        %v1195 = vsel %vm1180, %v1174, %v924
        %v1196 = vsel %vm1180, %v1175, %v926
        %v1197 = vsel %vm1180, %v1176, %v928
        %v1198 = vsel %vm1180, %v1177, %v930
        %v1199 = vsel %vm1180, %v1178, %v932
        %v1200 = vsel %vm1180, %v1179, %v934
        %vm1201 = vcmask 228352
        %v1202 = vsel %vm1201, %v1181, %v956
        %v1203 = vsel %vm1201, %v1182, %v958
        %v1204 = vsel %vm1201, %v1183, %v960
        %v1205 = vsel %vm1201, %v1184, %v962
        %v1206 = vsel %vm1201, %v1185, %v964
        %v1207 = vsel %vm1201, %v1186, %v966
        %v1208 = vsel %vm1201, %v1187, %v968
        %v1209 = vsel %vm1201, %v1188, %v970
        %v1210 = vsel %vm1201, %v1189, %v972
        %v1211 = vsel %vm1201, %v1190, %v974
        %v1212 = vsel %vm1201, %v1191, %v976
        %v1213 = vsel %vm1201, %v1192, %v978
        %v1214 = vsel %vm1201, %v1193, %v980
        %v1215 = vsel %vm1201, %v1194, %v982
        %v1216 = vsel %vm1201, %v1195, %v984
        %v1217 = vsel %vm1201, %v1196, %v986
        %v1218 = vsel %vm1201, %v1197, %v988
        %v1219 = vsel %vm1201, %v1198, %v990
        %v1220 = vsel %vm1201, %v1199, %v992
        %v1221 = vsel %vm1201, %v1200, %v994
        %vm1222 = vcmask 261120
        %v1223 = vsel %vm1222, %v1202, %v1016
        %v1224 = vsel %vm1222, %v1203, %v1018
        %v1225 = vsel %vm1222, %v1204, %v1020
        %v1226 = vsel %vm1222, %v1205, %v1022
        %v1227 = vsel %vm1222, %v1206, %v1024
        %v1228 = vsel %vm1222, %v1207, %v1026
        %v1229 = vsel %vm1222, %v1208, %v1028
        %v1230 = vsel %vm1222, %v1209, %v1030
        %v1231 = vsel %vm1222, %v1210, %v1032
        %v1232 = vsel %vm1222, %v1211, %v1034
        %v1233 = vsel %vm1222, %v1212, %v1036
        %v1234 = vsel %vm1222, %v1213, %v1038
        %v1235 = vsel %vm1222, %v1214, %v1040
        %v1236 = vsel %vm1222, %v1215, %v1042
        %v1237 = vsel %vm1222, %v1216, %v1044
        %v1238 = vsel %vm1222, %v1217, %v1046
        %v1239 = vsel %vm1222, %v1218, %v1048
        %v1240 = vsel %vm1222, %v1219, %v1050
        %v1241 = vsel %vm1222, %v1220, %v1052
        %v1242 = vsel %vm1222, %v1221, %v1054
        %v1243 = vpack.c.bf16 %v1224, %v1223
        %v1244 = vpack.c.bf16 %v1226, %v1225
        %v1245 = vpack.c.bf16 %v1228, %v1227
        %v1246 = vpack.c.bf16 %v1230, %v1229
        %v1247 = vpack.c.bf16 %v1232, %v1231
        %v1248 = vpack.c.bf16 %v1234, %v1233
        %v1249 = vpack.c.bf16 %v1236, %v1235
        %v1250 = vpack.c.bf16 %v1238, %v1237
        %v1251 = vpack.c.bf16 %v1240, %v1239
        %v1252 = vpack.c.bf16 %v1242, %v1241
        %v1253 = vld [vmem:[%s2] sm:$0xf]
        %v1254 = vld [vmem:[%s2 + $0x4] sm:$0xf]
        %v1255 = vld [vmem:[%s2 + $0x8] sm:$0xf]
        %v1256 = vld [vmem:[%s2 + $0xc] sm:$0xf]
        %v1257 = vld [vmem:[%s2 + $0x10] sm:$0x3]
        %v1259 = vlaneseq
        %v1260 = vshrl.u32 %v1259, 7
        %v1261 = vsub.s32 0, %v1260
        %v1262 = vrot.slane %v436, %v1261
        %v1269 = vunpack.c.l.b16 %v1253
        %v1270 = vunpack.c.l.b16 %v1254
        %v1271 = vunpack.c.l.b16 %v1255
        %v1272 = vunpack.c.l.b16 %v1256
        %v1273 = vunpack.c.l.b16 %v1257
        %v1274 = vpack.c.b16 %v1270, %v1269
        %v1275 = vpack.c.b16 %v1272, %v1271
        %v1276 = vpack.c.b16 %v1273, %v1273
        %vm1279 = vcmask 293888
        %v1281 = vsel %vm1279, %v1243, 0
        %v1284 = vsel %vm1279, %v1244, 0
        %v1287 = vsel %vm1279, %v1245, 0
        %v1290 = vsel %vm1279, %v1246, 0
        %v1293 = vsel %vm1279, %v1247, 0
        %v1296 = vsel %vm1279, %v1248, 0
        %v1299 = vsel %vm1279, %v1249, 0
        %v1302 = vsel %vm1279, %v1250, 0
        %v1305 = vsel %vm1279, %v1251, 0
        %v1308 = vsel %vm1279, %v1252, 0
        %vm1310 = vcmask 1041408
        %v1312 = vsel %vm1310, %v1276, 0
        %1314 = vmatprep.subr.bf16.mxu0 0
        %1315 = vmatpush1.bf16.msra.mxu0 %v1274
        %1316 = vmatprep.subr.bf16.mxu0 0
        %1317 = vmatpush1.bf16.msra.mxu0 %v1275
        %1318 = vmatprep.subr.bf16.mxu0 0
        %1319 = vmatpush1.bf16.msra.mxu0 %v1312
        %1320 = vmatprep.subr.bf16.mxu0 0
        %1321 = vmatpush1.bf16.msra.mxu0 0
        %1322 = vmatprep.subr.bf16.mxu0 0
        %1323 = vmatpush1.bf16.msra.mxu0 0
        %1324 = vmatprep.subr.bf16.mxu0 0
        %1325 = vmatpush1.bf16.msra.mxu0 0
        %1326 = vmatprep.subr.bf16.mxu0 0
        %1327 = vmatpush1.bf16.msra.mxu0 0
        %1328 = vmatprep.subr.bf16.mxu0 0
        %1329 = vmatpush1.bf16.msra.mxu0 0
        %1330 = vmatprep.subr.bf16.mxu0 0
        %1331 = vmatpush1.bf16.msra.mxu0 0
        %1332 = vmatprep.subr.bf16.mxu0 0
        %1333 = vmatpush1.bf16.msra.mxu0 0
        %1334 = vmatprep.subr.bf16.mxu0 0
        %1335 = vmatpush1.bf16.msra.mxu0 0
        %1336 = vmatprep.subr.bf16.mxu0 0
        %1337 = vmatpush1.bf16.msra.mxu0 0
        %1338 = vmatprep.subr.bf16.mxu0 0
        %1339 = vmatpush1.bf16.msra.mxu0 0
        %1340 = vmatprep.subr.bf16.mxu0 0
        %1341 = vmatpush1.bf16.msra.mxu0 0
        %1342 = vmatprep.subr.bf16.mxu0 0
        %1343 = vmatpush1.bf16.msra.mxu0 0
        %1344 = vmatprep.subr.bf16.mxu0 0
        %1345 = vmatpush1.bf16.msra.mxu0 0
        %1346 = vmatprep.mubr.bf16.mxu0 0
        %1347 = vmatmul.mubr.bf16.gmra.mrb[0].mxu0 %v1281
        %v1348 = vpop.f32.mrb[0].mxu0
        %v1349 = vadd.f32 %v1262, %v1348
        %v1350 = vpop.f32.mrb[0].mxu0
        %v1351 = vpop.f32.mrb[0].mxu0
        %v1352 = vadd.f32 %v1262, %v1351
        %v1353 = vpop.f32.mrb[0].mxu0
        %1354 = vmatprep.mubr.bf16.mxu0 0
        %1355 = vmatmul.mubr.bf16.gmra.mrb[0].mxu0 %v1284
        %v1356 = vpop.f32.mrb[0].mxu0
        %v1357 = vadd.f32 %v1262, %v1356
        %v1358 = vpop.f32.mrb[0].mxu0
        %v1359 = vpop.f32.mrb[0].mxu0
        %v1360 = vadd.f32 %v1262, %v1359
        %v1361 = vpop.f32.mrb[0].mxu0
        %1362 = vmatprep.mubr.bf16.mxu0 0
        %1363 = vmatmul.mubr.bf16.gmra.mrb[0].mxu0 %v1287
        %v1364 = vpop.f32.mrb[0].mxu0
        %v1365 = vadd.f32 %v1262, %v1364
        %v1366 = vpop.f32.mrb[0].mxu0
        %v1367 = vpop.f32.mrb[0].mxu0
        %v1368 = vadd.f32 %v1262, %v1367
        %v1369 = vpop.f32.mrb[0].mxu0
        %1370 = vmatprep.mubr.bf16.mxu0 0
        %1371 = vmatmul.mubr.bf16.gmra.mrb[0].mxu0 %v1290
        %v1372 = vpop.f32.mrb[0].mxu0
        %v1373 = vadd.f32 %v1262, %v1372
        %v1374 = vpop.f32.mrb[0].mxu0
        %v1375 = vpop.f32.mrb[0].mxu0
        %v1376 = vadd.f32 %v1262, %v1375
        %v1377 = vpop.f32.mrb[0].mxu0
        %1378 = vmatprep.mubr.bf16.mxu0 0
        %1379 = vmatmul.mubr.bf16.gmra.mrb[0].mxu0 %v1293
        %v1380 = vpop.f32.mrb[0].mxu0
        %v1381 = vadd.f32 %v1262, %v1380
        %v1382 = vpop.f32.mrb[0].mxu0
        %v1383 = vpop.f32.mrb[0].mxu0
        %v1384 = vadd.f32 %v1262, %v1383
        %v1385 = vpop.f32.mrb[0].mxu0
        %1386 = vmatprep.mubr.bf16.mxu0 0
        %1387 = vmatmul.mubr.bf16.gmra.mrb[0].mxu0 %v1296
        %v1388 = vpop.f32.mrb[0].mxu0
        %v1389 = vadd.f32 %v1262, %v1388
        %v1390 = vpop.f32.mrb[0].mxu0
        %v1391 = vpop.f32.mrb[0].mxu0
        %v1392 = vadd.f32 %v1262, %v1391
        %v1393 = vpop.f32.mrb[0].mxu0
        %1394 = vmatprep.mubr.bf16.mxu0 0
        %1395 = vmatmul.mubr.bf16.gmra.mrb[0].mxu0 %v1299
        %v1396 = vpop.f32.mrb[0].mxu0
        %v1397 = vadd.f32 %v1262, %v1396
        %v1398 = vpop.f32.mrb[0].mxu0
        %v1399 = vpop.f32.mrb[0].mxu0
        %v1400 = vadd.f32 %v1262, %v1399
        %v1401 = vpop.f32.mrb[0].mxu0
        %1402 = vmatprep.mubr.bf16.mxu0 0
        %1403 = vmatmul.mubr.bf16.gmra.mrb[0].mxu0 %v1302
        %v1404 = vpop.f32.mrb[0].mxu0
        %v1405 = vadd.f32 %v1262, %v1404
        %v1406 = vpop.f32.mrb[0].mxu0
        %v1407 = vpop.f32.mrb[0].mxu0
        %v1408 = vadd.f32 %v1262, %v1407
        %v1409 = vpop.f32.mrb[0].mxu0
        %1410 = vmatprep.mubr.bf16.mxu0 0
        %1411 = vmatmul.mubr.bf16.gmra.mrb[0].mxu0 %v1305
        %v1412 = vpop.f32.mrb[0].mxu0
        %v1413 = vadd.f32 %v1262, %v1412
        %v1414 = vpop.f32.mrb[0].mxu0
        %v1415 = vpop.f32.mrb[0].mxu0
        %v1416 = vadd.f32 %v1262, %v1415
        %v1417 = vpop.f32.mrb[0].mxu0
        %1418 = vmatprep.mubr.bf16.mxu0 0
        %1419 = vmatmul.mubr.bf16.gmra.mrb[0].mxu0 %v1308
        %v1420 = vpop.f32.mrb[0].mxu0
        %v1421 = vadd.f32 %v1262, %v1420
        %v1422 = vpop.f32.mrb[0].mxu0
        %v1423 = vpop.f32.mrb[0].mxu0
        %v1424 = vadd.f32 %v1262, %v1423
        %v1425 = vpop.f32.mrb[0].mxu0
        %1426 = vdwg.mxu0
        %v1427 = vmax.f32 %v1349, 0.0
        %v1428 = vmax.f32 %v1352, 0.0
        %v1429 = vmax.f32 %v1357, 0.0
        %v1430 = vmax.f32 %v1360, 0.0
        %v1431 = vmax.f32 %v1365, 0.0
        %v1432 = vmax.f32 %v1368, 0.0
        %v1433 = vmax.f32 %v1373, 0.0
        %v1434 = vmax.f32 %v1376, 0.0
        %v1435 = vmax.f32 %v1381, 0.0
        %v1436 = vmax.f32 %v1384, 0.0
        %v1437 = vmax.f32 %v1389, 0.0
        %v1438 = vmax.f32 %v1392, 0.0
        %v1439 = vmax.f32 %v1397, 0.0
        %v1440 = vmax.f32 %v1400, 0.0
        %v1441 = vmax.f32 %v1405, 0.0
        %v1442 = vmax.f32 %v1408, 0.0
        %v1443 = vmax.f32 %v1413, 0.0
        %v1444 = vmax.f32 %v1416, 0.0
        %v1445 = vmax.f32 %v1421, 0.0
        %v1446 = vmax.f32 %v1424, 0.0
        %1447 = vst.msk [vmem:[#allocation2 + $0x1] sm:$0xff] %vm1075, %v1427
        %1448 = vst.msk [vmem:[#allocation2 + $0x9] sm:$0xff] %vm1075, %v1428
        %1449 = vst.msk [vmem:[#allocation2 + $0x19] sm:$0xff] %vm1075, %v1429
        %1450 = vst.msk [vmem:[#allocation2 + $0x21] sm:$0xff] %vm1075, %v1430
        %1451 = vst.msk [vmem:[#allocation2 + $0x31] sm:$0xff] %vm1075, %v1431
        %1452 = vst.msk [vmem:[#allocation2 + $0x39] sm:$0xff] %vm1075, %v1432
        %1453 = vst.msk [vmem:[#allocation2 + $0x49] sm:$0xff] %vm1075, %v1433
        %1454 = vst.msk [vmem:[#allocation2 + $0x51] sm:$0xff] %vm1075, %v1434
        %1455 = vst.msk [vmem:[#allocation2 + $0x61] sm:$0xff] %vm1075, %v1435
        %1456 = vst.msk [vmem:[#allocation2 + $0x69] sm:$0xff] %vm1075, %v1436
        %1457 = vst.msk [vmem:[#allocation2 + $0x79] sm:$0xff] %vm1075, %v1437
        %1458 = vst.msk [vmem:[#allocation2 + $0x81] sm:$0xff] %vm1075, %v1438
        %1459 = vst.msk [vmem:[#allocation2 + $0x91] sm:$0xff] %vm1075, %v1439
        %1460 = vst.msk [vmem:[#allocation2 + $0x99] sm:$0xff] %vm1075, %v1440
        %1461 = vst.msk [vmem:[#allocation2 + $0xa9] sm:$0xff] %vm1075, %v1441
        %1462 = vst.msk [vmem:[#allocation2 + $0xb1] sm:$0xff] %vm1075, %v1442
        %1463 = vst.msk [vmem:[#allocation2 + $0xc1] sm:$0xff] %vm1075, %v1443
        %1464 = vst.msk [vmem:[#allocation2 + $0xc9] sm:$0xff] %vm1075, %v1444
        %1465 = vst.msk [vmem:[#allocation2 + $0xd9] sm:$0xff] %vm1075, %v1445
        %1466 = vst.msk [vmem:[#allocation2 + $0xe1] sm:$0xff] %vm1075, %v1446
        %vm1467 = vcmask 24576
        %1468 = vst.msk [vmem:[#allocation2] sm:$0x1] %vm1467, 0.0
        %1469 = vst.msk [vmem:[#allocation2 + $0x18] sm:$0x1] %vm1467, 0.0
        %1470 = vst.msk [vmem:[#allocation2 + $0x30] sm:$0x1] %vm1467, 0.0
        %1471 = vst.msk [vmem:[#allocation2 + $0x48] sm:$0x1] %vm1467, 0.0
        %1472 = vst.msk [vmem:[#allocation2 + $0x60] sm:$0x1] %vm1467, 0.0
        %1473 = vst.msk [vmem:[#allocation2 + $0x78] sm:$0x1] %vm1467, 0.0
        %1474 = vst.msk [vmem:[#allocation2 + $0x90] sm:$0x1] %vm1467, 0.0
        %1475 = vst.msk [vmem:[#allocation2 + $0xa8] sm:$0x1] %vm1467, 0.0
        %1476 = vst.msk [vmem:[#allocation2 + $0xc0] sm:$0x1] %vm1467, 0.0
        %1477 = vst.msk [vmem:[#allocation2 + $0xd8] sm:$0x1] %vm1467, 0.0
        %1478 = vst.msk [vmem:[#allocation2 + $0x11] sm:$0x1] %vm1467, 0.0
        %1479 = vst.msk [vmem:[#allocation2 + $0x29] sm:$0x1] %vm1467, 0.0
        %1480 = vst.msk [vmem:[#allocation2 + $0x41] sm:$0x1] %vm1467, 0.0
        %1481 = vst.msk [vmem:[#allocation2 + $0x59] sm:$0x1] %vm1467, 0.0
        %1482 = vst.msk [vmem:[#allocation2 + $0x71] sm:$0x1] %vm1467, 0.0
        %1483 = vst.msk [vmem:[#allocation2 + $0x89] sm:$0x1] %vm1467, 0.0
        %1484 = vst.msk [vmem:[#allocation2 + $0xa1] sm:$0x1] %vm1467, 0.0
        %1485 = vst.msk [vmem:[#allocation2 + $0xb9] sm:$0x1] %vm1467, 0.0
        %1486 = vst.msk [vmem:[#allocation2 + $0xd1] sm:$0x1] %vm1467, 0.0
        %1487 = vst.msk [vmem:[#allocation2 + $0xe9] sm:$0x1] %vm1467, 0.0
        %p1488 = scmp.eq.s32.totalorder %s27, 0
        // Predicated region
        $region53: #{tpu_custom_call.1} parent=51 // pred_check
          %p1489 = pneg %p1488
        $region54: #{tpu_custom_call.1} parent=51 // pred_check_branch
          %1491 = sbr.rel (%p1489) target = $region56
        $region55: #{tpu_custom_call.1} parent=51 // pred_region
          %1492 = vst.msk [vmem:[#allocation2] sm:$0xff] %vm1075, 0.0
          %1493 = vst.msk [vmem:[#allocation2 + $0x8] sm:$0xff] %vm1075, 0.0
          %vm1494 = vcmask 25600
          %1495 = vst.msk [vmem:[#allocation2 + $0x10] sm:$0x3] %vm1494, 0.0
        $region56: #{tpu_custom_call.1} parent=51 // pred_fallthru
          _
        %p1496 = scmp.eq.s32.totalorder %s27, 1
        // Predicated region
        $region57: #{tpu_custom_call.1} parent=51 // pred_check
          %p1497 = pneg %p1496
        $region58: #{tpu_custom_call.1} parent=51 // pred_check_branch
          %1499 = sbr.rel (%p1497) target = $region60
        $region59: #{tpu_custom_call.1} parent=51 // pred_region
          %s1500 = scalar_lea.vmem [#allocation2], 216
          %1501 = vst.msk [vmem:[%s1500] sm:$0xff] %vm1075, 0.0
          %1502 = vst.msk [vmem:[%s1500 + $0x8] sm:$0xff] %vm1075, 0.0
          %vm1503 = vcmask 25600
          %1504 = vst.msk [vmem:[%s1500 + $0x10] sm:$0x3] %vm1503, 0.0
        $region60: #{tpu_custom_call.1} parent=51 // pred_fallthru
          _
        %v1505 = vld [vmem:[#allocation2] sm:$0xff]
        %v1506 = vld [vmem:[#allocation2 + $0x8] sm:$0xff]
        %v1507 = vld [vmem:[#allocation2 + $0x10] sm:$0x3]
        %v1508 = vld [vmem:[#allocation2 + $0x18] sm:$0xff]
        %v1509 = vld [vmem:[#allocation2 + $0x20] sm:$0xff]
        %v1510 = vld [vmem:[#allocation2 + $0x28] sm:$0x3]
        %v1511 = vld [vmem:[#allocation2 + $0x30] sm:$0xff]
        %v1512 = vld [vmem:[#allocation2 + $0x38] sm:$0xff]
        %v1513 = vld [vmem:[#allocation2 + $0x40] sm:$0x3]
        %v1514 = vld [vmem:[#allocation2 + $0x48] sm:$0xff]
        %v1515 = vld [vmem:[#allocation2 + $0x50] sm:$0xff]
        %v1516 = vld [vmem:[#allocation2 + $0x58] sm:$0x3]
        %v1517 = vld [vmem:[#allocation2 + $0x60] sm:$0xff]
        %v1518 = vld [vmem:[#allocation2 + $0x68] sm:$0xff]
        %v1519 = vld [vmem:[#allocation2 + $0x70] sm:$0x3]
        %v1520 = vld [vmem:[#allocation2 + $0x78] sm:$0xff]
        %v1521 = vld [vmem:[#allocation2 + $0x80] sm:$0xff]
        %v1522 = vld [vmem:[#allocation2 + $0x88] sm:$0x3]
        %v1523 = vld [vmem:[#allocation2 + $0x90] sm:$0xff]
        %v1524 = vld [vmem:[#allocation2 + $0x98] sm:$0xff]
        %v1525 = vld [vmem:[#allocation2 + $0xa0] sm:$0x3]
        %v1526 = vld [vmem:[#allocation2 + $0xa8] sm:$0xff]
        %v1527 = vld [vmem:[#allocation2 + $0xb0] sm:$0xff]
        %v1528 = vld [vmem:[#allocation2 + $0xb8] sm:$0x3]
        %v1529 = vld [vmem:[#allocation2 + $0xc0] sm:$0xff]
        %v1530 = vld [vmem:[#allocation2 + $0xc8] sm:$0xff]
        %v1531 = vld [vmem:[#allocation2 + $0xd0] sm:$0x3]
        %v1532 = vld [vmem:[#allocation2 + $0xd8] sm:$0xff]
        %v1533 = vld [vmem:[#allocation2 + $0xe0] sm:$0xff]
        %v1534 = vld [vmem:[#allocation2 + $0xe8] sm:$0x3]
        %v1535 = vld [vmem:[%s5] sm:$0x1]
        %v1560 = vrot.slane %v1505, 1
        %v1561 = vrot.slane %v1506, 1
        %v1562 = vsel %vm467, %v1560, %v1561
        %v1563 = vrot.slane %v1507, 1
        %v1564 = vsel %vm467, %v1561, %v1563
        %v1565 = vrot.slane %v1508, 1
        %v1566 = vrot.slane %v1509, 1
        %v1567 = vsel %vm467, %v1565, %v1566
        %v1568 = vrot.slane %v1510, 1
        %v1569 = vsel %vm467, %v1566, %v1568
        %v1570 = vrot.slane %v1511, 1
        %v1571 = vrot.slane %v1512, 1
        %v1572 = vsel %vm467, %v1570, %v1571
        %v1573 = vrot.slane %v1513, 1
        %v1574 = vsel %vm467, %v1571, %v1573
        %v1575 = vrot.slane %v1514, 1
        %v1576 = vrot.slane %v1515, 1
        %v1577 = vsel %vm467, %v1575, %v1576
        %v1578 = vrot.slane %v1516, 1
        %v1579 = vsel %vm467, %v1576, %v1578
        %v1580 = vrot.slane %v1517, 1
        %v1581 = vrot.slane %v1518, 1
        %v1582 = vsel %vm467, %v1580, %v1581
        %v1583 = vrot.slane %v1519, 1
        %v1584 = vsel %vm467, %v1581, %v1583
        %v1585 = vrot.slane %v1520, 1
        %v1586 = vrot.slane %v1521, 1
        %v1587 = vsel %vm467, %v1585, %v1586
        %v1588 = vrot.slane %v1522, 1
        %v1589 = vsel %vm467, %v1586, %v1588
        %v1590 = vrot.slane %v1523, 1
        %v1591 = vrot.slane %v1524, 1
        %v1592 = vsel %vm467, %v1590, %v1591
        %v1593 = vrot.slane %v1525, 1
        %v1594 = vsel %vm467, %v1591, %v1593
        %v1595 = vrot.slane %v1526, 1
        %v1596 = vrot.slane %v1527, 1
        %v1597 = vsel %vm467, %v1595, %v1596
        %v1598 = vrot.slane %v1528, 1
        %v1599 = vsel %vm467, %v1596, %v1598
        %v1600 = vrot.slane %v1505, 2
        %v1601 = vrot.slane %v1506, 2
        %v1602 = vsel %vm518, %v1600, %v1601
        %v1603 = vrot.slane %v1507, 2
        %v1604 = vsel %vm518, %v1601, %v1603
        %v1605 = vrot.slane %v1508, 2
        %v1606 = vrot.slane %v1509, 2
        %v1607 = vsel %vm518, %v1605, %v1606
        %v1608 = vrot.slane %v1510, 2
        %v1609 = vsel %vm518, %v1606, %v1608
        %v1610 = vrot.slane %v1511, 2
        %v1611 = vrot.slane %v1512, 2
        %v1612 = vsel %vm518, %v1610, %v1611
        %v1613 = vrot.slane %v1513, 2
        %v1614 = vsel %vm518, %v1611, %v1613
        %v1615 = vrot.slane %v1514, 2
        %v1616 = vrot.slane %v1515, 2
        %v1617 = vsel %vm518, %v1615, %v1616
        %v1618 = vrot.slane %v1516, 2
        %v1619 = vsel %vm518, %v1616, %v1618
        %v1620 = vrot.slane %v1517, 2
        %v1621 = vrot.slane %v1518, 2
        %v1622 = vsel %vm518, %v1620, %v1621
        %v1623 = vrot.slane %v1519, 2
        %v1624 = vsel %vm518, %v1621, %v1623
        %v1625 = vrot.slane %v1520, 2
        %v1626 = vrot.slane %v1521, 2
        %v1627 = vsel %vm518, %v1625, %v1626
        %v1628 = vrot.slane %v1522, 2
        %v1629 = vsel %vm518, %v1626, %v1628
        %v1630 = vrot.slane %v1523, 2
        %v1631 = vrot.slane %v1524, 2
        %v1632 = vsel %vm518, %v1630, %v1631
        %v1633 = vrot.slane %v1525, 2
        %v1634 = vsel %vm518, %v1631, %v1633
        %v1635 = vrot.slane %v1526, 2
        %v1636 = vrot.slane %v1527, 2
        %v1637 = vsel %vm518, %v1635, %v1636
        %v1638 = vrot.slane %v1528, 2
        %v1639 = vsel %vm518, %v1636, %v1638
        %v1643 = vrot.slane %v1529, 1
        %v1644 = vrot.slane %v1530, 1
        %v1645 = vsel %vm467, %v1643, %v1644
        %v1646 = vrot.slane %v1531, 1
        %v1647 = vsel %vm467, %v1644, %v1646
        %v1648 = vrot.slane %v1529, 2
        %v1649 = vrot.slane %v1530, 2
        %v1650 = vsel %vm518, %v1648, %v1649
        %v1651 = vrot.slane %v1531, 2
        %v1652 = vsel %vm518, %v1649, %v1651
        %v1656 = vrot.slane %v1532, 1
        %v1657 = vrot.slane %v1533, 1
        %v1658 = vsel %vm467, %v1656, %v1657
        %v1659 = vrot.slane %v1534, 1
        %v1660 = vsel %vm467, %v1657, %v1659
        %v1661 = vrot.slane %v1532, 2
        %v1662 = vrot.slane %v1533, 2
        %v1663 = vsel %vm518, %v1661, %v1662
        %v1664 = vrot.slane %v1534, 2
        %v1665 = vsel %vm518, %v1662, %v1664
        %1666 = vrot.lane.b32.xlu0 %v1562, 4
        %v1667 = vpop.permute.xlu0 %1666
        %1668 = vrot.lane.b32.xlu0 %v1564, 4
        %v1669 = vpop.permute.xlu0 %1668
        %1670 = vrot.lane.b32.xlu0 %v1567, 4
        %v1671 = vpop.permute.xlu0 %1670
        %1672 = vrot.lane.b32.xlu0 %v1569, 4
        %v1673 = vpop.permute.xlu0 %1672
        %1674 = vrot.lane.b32.xlu0 %v1572, 4
        %v1675 = vpop.permute.xlu0 %1674
        %1676 = vrot.lane.b32.xlu0 %v1574, 4
        %v1677 = vpop.permute.xlu0 %1676
        %1678 = vrot.lane.b32.xlu0 %v1577, 4
        %v1679 = vpop.permute.xlu0 %1678
        %1680 = vrot.lane.b32.xlu0 %v1579, 4
        %v1681 = vpop.permute.xlu0 %1680
        %1682 = vrot.lane.b32.xlu0 %v1582, 4
        %v1683 = vpop.permute.xlu0 %1682
        %1684 = vrot.lane.b32.xlu0 %v1584, 4
        %v1685 = vpop.permute.xlu0 %1684
        %1686 = vrot.lane.b32.xlu0 %v1587, 4
        %v1687 = vpop.permute.xlu0 %1686
        %1688 = vrot.lane.b32.xlu0 %v1589, 4
        %v1689 = vpop.permute.xlu0 %1688
        %1690 = vrot.lane.b32.xlu0 %v1592, 4
        %v1691 = vpop.permute.xlu0 %1690
        %1692 = vrot.lane.b32.xlu0 %v1594, 4
        %v1693 = vpop.permute.xlu0 %1692
        %1694 = vrot.lane.b32.xlu0 %v1597, 4
        %v1695 = vpop.permute.xlu0 %1694
        %1696 = vrot.lane.b32.xlu0 %v1599, 4
        %v1697 = vpop.permute.xlu0 %1696
        %1714 = vrot.lane.b32.xlu0 %v1602, 8
        %v1715 = vpop.permute.xlu0 %1714
        %1716 = vrot.lane.b32.xlu0 %v1604, 8
        %v1717 = vpop.permute.xlu0 %1716
        %1718 = vrot.lane.b32.xlu0 %v1607, 8
        %v1719 = vpop.permute.xlu0 %1718
        %1720 = vrot.lane.b32.xlu0 %v1609, 8
        %v1721 = vpop.permute.xlu0 %1720
        %1722 = vrot.lane.b32.xlu0 %v1612, 8
        %v1723 = vpop.permute.xlu0 %1722
        %1724 = vrot.lane.b32.xlu0 %v1614, 8
        %v1725 = vpop.permute.xlu0 %1724
        %1726 = vrot.lane.b32.xlu0 %v1617, 8
        %v1727 = vpop.permute.xlu0 %1726
        %1728 = vrot.lane.b32.xlu0 %v1619, 8
        %v1729 = vpop.permute.xlu0 %1728
        %1730 = vrot.lane.b32.xlu0 %v1622, 8
        %v1731 = vpop.permute.xlu0 %1730
        %1732 = vrot.lane.b32.xlu0 %v1624, 8
        %v1733 = vpop.permute.xlu0 %1732
        %1734 = vrot.lane.b32.xlu0 %v1627, 8
        %v1735 = vpop.permute.xlu0 %1734
        %1736 = vrot.lane.b32.xlu0 %v1629, 8
        %v1737 = vpop.permute.xlu0 %1736
        %1738 = vrot.lane.b32.xlu0 %v1632, 8
        %v1739 = vpop.permute.xlu0 %1738
        %1740 = vrot.lane.b32.xlu0 %v1634, 8
        %v1741 = vpop.permute.xlu0 %1740
        %1742 = vrot.lane.b32.xlu0 %v1637, 8
        %v1743 = vpop.permute.xlu0 %1742
        %1744 = vrot.lane.b32.xlu0 %v1639, 8
        %v1745 = vpop.permute.xlu0 %1744
        %1762 = vrot.lane.b32.xlu0 %v1508, 12
        %v1763 = vpop.permute.xlu0 %1762
        %1764 = vrot.lane.b32.xlu0 %v1509, 12
        %v1765 = vpop.permute.xlu0 %1764
        %1766 = vrot.lane.b32.xlu0 %v1511, 12
        %v1767 = vpop.permute.xlu0 %1766
        %1768 = vrot.lane.b32.xlu0 %v1512, 12
        %v1769 = vpop.permute.xlu0 %1768
        %1770 = vrot.lane.b32.xlu0 %v1514, 12
        %v1771 = vpop.permute.xlu0 %1770
        %1772 = vrot.lane.b32.xlu0 %v1515, 12
        %v1773 = vpop.permute.xlu0 %1772
        %1774 = vrot.lane.b32.xlu0 %v1517, 12
        %v1775 = vpop.permute.xlu0 %1774
        %1776 = vrot.lane.b32.xlu0 %v1518, 12
        %v1777 = vpop.permute.xlu0 %1776
        %1778 = vrot.lane.b32.xlu0 %v1520, 12
        %v1779 = vpop.permute.xlu0 %1778
        %1780 = vrot.lane.b32.xlu0 %v1521, 12
        %v1781 = vpop.permute.xlu0 %1780
        %1782 = vrot.lane.b32.xlu0 %v1523, 12
        %v1783 = vpop.permute.xlu0 %1782
        %1784 = vrot.lane.b32.xlu0 %v1524, 12
        %v1785 = vpop.permute.xlu0 %1784
        %1786 = vrot.lane.b32.xlu0 %v1526, 12
        %v1787 = vpop.permute.xlu0 %1786
        %1788 = vrot.lane.b32.xlu0 %v1527, 12
        %v1789 = vpop.permute.xlu0 %1788
        %1790 = vrot.lane.b32.xlu0 %v1529, 12
        %v1791 = vpop.permute.xlu0 %1790
        %1792 = vrot.lane.b32.xlu0 %v1530, 12
        %v1793 = vpop.permute.xlu0 %1792
        %1810 = vrot.lane.b32.xlu0 %v1567, 16
        %v1811 = vpop.permute.xlu0 %1810
        %1812 = vrot.lane.b32.xlu0 %v1569, 16
        %v1813 = vpop.permute.xlu0 %1812
        %1814 = vrot.lane.b32.xlu0 %v1572, 16
        %v1815 = vpop.permute.xlu0 %1814
        %1816 = vrot.lane.b32.xlu0 %v1574, 16
        %v1817 = vpop.permute.xlu0 %1816
        %1818 = vrot.lane.b32.xlu0 %v1577, 16
        %v1819 = vpop.permute.xlu0 %1818
        %1820 = vrot.lane.b32.xlu0 %v1579, 16
        %v1821 = vpop.permute.xlu0 %1820
        %1822 = vrot.lane.b32.xlu0 %v1582, 16
        %v1823 = vpop.permute.xlu0 %1822
        %1824 = vrot.lane.b32.xlu0 %v1584, 16
        %v1825 = vpop.permute.xlu0 %1824
        %1826 = vrot.lane.b32.xlu0 %v1587, 16
        %v1827 = vpop.permute.xlu0 %1826
        %1828 = vrot.lane.b32.xlu0 %v1589, 16
        %v1829 = vpop.permute.xlu0 %1828
        %1830 = vrot.lane.b32.xlu0 %v1592, 16
        %v1831 = vpop.permute.xlu0 %1830
        %1832 = vrot.lane.b32.xlu0 %v1594, 16
        %v1833 = vpop.permute.xlu0 %1832
        %1834 = vrot.lane.b32.xlu0 %v1597, 16
        %v1835 = vpop.permute.xlu0 %1834
        %1836 = vrot.lane.b32.xlu0 %v1599, 16
        %v1837 = vpop.permute.xlu0 %1836
        %1838 = vrot.lane.b32.xlu0 %v1645, 16
        %v1839 = vpop.permute.xlu0 %1838
        %1840 = vrot.lane.b32.xlu0 %v1647, 16
        %v1841 = vpop.permute.xlu0 %1840
        %1858 = vrot.lane.b32.xlu0 %v1607, 20
        %v1859 = vpop.permute.xlu0 %1858
        %1860 = vrot.lane.b32.xlu0 %v1609, 20
        %v1861 = vpop.permute.xlu0 %1860
        %1862 = vrot.lane.b32.xlu0 %v1612, 20
        %v1863 = vpop.permute.xlu0 %1862
        %1864 = vrot.lane.b32.xlu0 %v1614, 20
        %v1865 = vpop.permute.xlu0 %1864
        %1866 = vrot.lane.b32.xlu0 %v1617, 20
        %v1867 = vpop.permute.xlu0 %1866
        %1868 = vrot.lane.b32.xlu0 %v1619, 20
        %v1869 = vpop.permute.xlu0 %1868
        %1870 = vrot.lane.b32.xlu0 %v1622, 20
        %v1871 = vpop.permute.xlu0 %1870
        %1872 = vrot.lane.b32.xlu0 %v1624, 20
        %v1873 = vpop.permute.xlu0 %1872
        %1874 = vrot.lane.b32.xlu0 %v1627, 20
        %v1875 = vpop.permute.xlu0 %1874
        %1876 = vrot.lane.b32.xlu0 %v1629, 20
        %v1877 = vpop.permute.xlu0 %1876
        %1878 = vrot.lane.b32.xlu0 %v1632, 20
        %v1879 = vpop.permute.xlu0 %1878
        %1880 = vrot.lane.b32.xlu0 %v1634, 20
        %v1881 = vpop.permute.xlu0 %1880
        %1882 = vrot.lane.b32.xlu0 %v1637, 20
        %v1883 = vpop.permute.xlu0 %1882
        %1884 = vrot.lane.b32.xlu0 %v1639, 20
        %v1885 = vpop.permute.xlu0 %1884
        %1886 = vrot.lane.b32.xlu0 %v1650, 20
        %v1887 = vpop.permute.xlu0 %1886
        %1888 = vrot.lane.b32.xlu0 %v1652, 20
        %v1889 = vpop.permute.xlu0 %1888
        %1906 = vrot.lane.b32.xlu0 %v1511, 24
        %v1907 = vpop.permute.xlu0 %1906
        %1908 = vrot.lane.b32.xlu0 %v1512, 24
        %v1909 = vpop.permute.xlu0 %1908
        %1910 = vrot.lane.b32.xlu0 %v1514, 24
        %v1911 = vpop.permute.xlu0 %1910
        %1912 = vrot.lane.b32.xlu0 %v1515, 24
        %v1913 = vpop.permute.xlu0 %1912
        %1914 = vrot.lane.b32.xlu0 %v1517, 24
        %v1915 = vpop.permute.xlu0 %1914
        %1916 = vrot.lane.b32.xlu0 %v1518, 24
        %v1917 = vpop.permute.xlu0 %1916
        %1918 = vrot.lane.b32.xlu0 %v1520, 24
        %v1919 = vpop.permute.xlu0 %1918
        %1920 = vrot.lane.b32.xlu0 %v1521, 24
        %v1921 = vpop.permute.xlu0 %1920
        %1922 = vrot.lane.b32.xlu0 %v1523, 24
        %v1923 = vpop.permute.xlu0 %1922
        %1924 = vrot.lane.b32.xlu0 %v1524, 24
        %v1925 = vpop.permute.xlu0 %1924
        %1926 = vrot.lane.b32.xlu0 %v1526, 24
        %v1927 = vpop.permute.xlu0 %1926
        %1928 = vrot.lane.b32.xlu0 %v1527, 24
        %v1929 = vpop.permute.xlu0 %1928
        %1930 = vrot.lane.b32.xlu0 %v1529, 24
        %v1931 = vpop.permute.xlu0 %1930
        %1932 = vrot.lane.b32.xlu0 %v1530, 24
        %v1933 = vpop.permute.xlu0 %1932
        %1934 = vrot.lane.b32.xlu0 %v1532, 24
        %v1935 = vpop.permute.xlu0 %1934
        %1936 = vrot.lane.b32.xlu0 %v1533, 24
        %v1937 = vpop.permute.xlu0 %1936
        %1954 = vrot.lane.b32.xlu0 %v1572, 28
        %v1955 = vpop.permute.xlu0 %1954
        %1956 = vrot.lane.b32.xlu0 %v1574, 28
        %v1957 = vpop.permute.xlu0 %1956
        %1958 = vrot.lane.b32.xlu0 %v1577, 28
        %v1959 = vpop.permute.xlu0 %1958
        %1960 = vrot.lane.b32.xlu0 %v1579, 28
        %v1961 = vpop.permute.xlu0 %1960
        %1962 = vrot.lane.b32.xlu0 %v1582, 28
        %v1963 = vpop.permute.xlu0 %1962
        %1964 = vrot.lane.b32.xlu0 %v1584, 28
        %v1965 = vpop.permute.xlu0 %1964
        %1966 = vrot.lane.b32.xlu0 %v1587, 28
        %v1967 = vpop.permute.xlu0 %1966
        %1968 = vrot.lane.b32.xlu0 %v1589, 28
        %v1969 = vpop.permute.xlu0 %1968
        %1970 = vrot.lane.b32.xlu0 %v1592, 28
        %v1971 = vpop.permute.xlu0 %1970
        %1972 = vrot.lane.b32.xlu0 %v1594, 28
        %v1973 = vpop.permute.xlu0 %1972
        %1974 = vrot.lane.b32.xlu0 %v1597, 28
        %v1975 = vpop.permute.xlu0 %1974
        %1976 = vrot.lane.b32.xlu0 %v1599, 28
        %v1977 = vpop.permute.xlu0 %1976
        %1978 = vrot.lane.b32.xlu0 %v1645, 28
        %v1979 = vpop.permute.xlu0 %1978
        %1980 = vrot.lane.b32.xlu0 %v1647, 28
        %v1981 = vpop.permute.xlu0 %1980
        %1982 = vrot.lane.b32.xlu0 %v1658, 28
        %v1983 = vpop.permute.xlu0 %1982
        %1984 = vrot.lane.b32.xlu0 %v1660, 28
        %v1985 = vpop.permute.xlu0 %1984
        %2002 = vrot.lane.b32.xlu0 %v1612, 32
        %v2003 = vpop.permute.xlu0 %2002
        %2004 = vrot.lane.b32.xlu0 %v1614, 32
        %v2005 = vpop.permute.xlu0 %2004
        %2006 = vrot.lane.b32.xlu0 %v1617, 32
        %v2007 = vpop.permute.xlu0 %2006
        %2008 = vrot.lane.b32.xlu0 %v1619, 32
        %v2009 = vpop.permute.xlu0 %2008
        %2010 = vrot.lane.b32.xlu0 %v1622, 32
        %v2011 = vpop.permute.xlu0 %2010
        %2012 = vrot.lane.b32.xlu0 %v1624, 32
        %v2013 = vpop.permute.xlu0 %2012
        %2014 = vrot.lane.b32.xlu0 %v1627, 32
        %v2015 = vpop.permute.xlu0 %2014
        %2016 = vrot.lane.b32.xlu0 %v1629, 32
        %v2017 = vpop.permute.xlu0 %2016
        %2018 = vrot.lane.b32.xlu0 %v1632, 32
        %v2019 = vpop.permute.xlu0 %2018
        %2020 = vrot.lane.b32.xlu0 %v1634, 32
        %v2021 = vpop.permute.xlu0 %2020
        %2022 = vrot.lane.b32.xlu0 %v1637, 32
        %v2023 = vpop.permute.xlu0 %2022
        %2024 = vrot.lane.b32.xlu0 %v1639, 32
        %v2025 = vpop.permute.xlu0 %2024
        %2026 = vrot.lane.b32.xlu0 %v1650, 32
        %v2027 = vpop.permute.xlu0 %2026
        %2028 = vrot.lane.b32.xlu0 %v1652, 32
        %v2029 = vpop.permute.xlu0 %2028
        %2030 = vrot.lane.b32.xlu0 %v1663, 32
        %v2031 = vpop.permute.xlu0 %2030
        %2032 = vrot.lane.b32.xlu0 %v1665, 32
        %v2033 = vpop.permute.xlu0 %2032
        %v2050 = vsel %vm1075, %v1505, %v1667
        %v2051 = vsel %vm1075, %v1506, %v1669
        %v2052 = vsel %vm1075, %v1508, %v1671
        %v2053 = vsel %vm1075, %v1509, %v1673
        %v2054 = vsel %vm1075, %v1511, %v1675
        %v2055 = vsel %vm1075, %v1512, %v1677
        %v2056 = vsel %vm1075, %v1514, %v1679
        %v2057 = vsel %vm1075, %v1515, %v1681
        %v2058 = vsel %vm1075, %v1517, %v1683
        %v2059 = vsel %vm1075, %v1518, %v1685
        %v2060 = vsel %vm1075, %v1520, %v1687
        %v2061 = vsel %vm1075, %v1521, %v1689
        %v2062 = vsel %vm1075, %v1523, %v1691
        %v2063 = vsel %vm1075, %v1524, %v1693
        %v2064 = vsel %vm1075, %v1526, %v1695
        %v2065 = vsel %vm1075, %v1527, %v1697
        %v2066 = vsel %vm1096, %v2050, %v1715
        %v2067 = vsel %vm1096, %v2051, %v1717
        %v2068 = vsel %vm1096, %v2052, %v1719
        %v2069 = vsel %vm1096, %v2053, %v1721
        %v2070 = vsel %vm1096, %v2054, %v1723
        %v2071 = vsel %vm1096, %v2055, %v1725
        %v2072 = vsel %vm1096, %v2056, %v1727
        %v2073 = vsel %vm1096, %v2057, %v1729
        %v2074 = vsel %vm1096, %v2058, %v1731
        %v2075 = vsel %vm1096, %v2059, %v1733
        %v2076 = vsel %vm1096, %v2060, %v1735
        %v2077 = vsel %vm1096, %v2061, %v1737
        %v2078 = vsel %vm1096, %v2062, %v1739
        %v2079 = vsel %vm1096, %v2063, %v1741
        %v2080 = vsel %vm1096, %v2064, %v1743
        %v2081 = vsel %vm1096, %v2065, %v1745
        %v2082 = vsel %vm1117, %v2066, %v1763
        %v2083 = vsel %vm1117, %v2067, %v1765
        %v2084 = vsel %vm1117, %v2068, %v1767
        %v2085 = vsel %vm1117, %v2069, %v1769
        %v2086 = vsel %vm1117, %v2070, %v1771
        %v2087 = vsel %vm1117, %v2071, %v1773
        %v2088 = vsel %vm1117, %v2072, %v1775
        %v2089 = vsel %vm1117, %v2073, %v1777
        %v2090 = vsel %vm1117, %v2074, %v1779
        %v2091 = vsel %vm1117, %v2075, %v1781
        %v2092 = vsel %vm1117, %v2076, %v1783
        %v2093 = vsel %vm1117, %v2077, %v1785
        %v2094 = vsel %vm1117, %v2078, %v1787
        %v2095 = vsel %vm1117, %v2079, %v1789
        %v2096 = vsel %vm1117, %v2080, %v1791
        %v2097 = vsel %vm1117, %v2081, %v1793
        %v2098 = vsel %vm1138, %v2082, %v1811
        %v2099 = vsel %vm1138, %v2083, %v1813
        %v2100 = vsel %vm1138, %v2084, %v1815
        %v2101 = vsel %vm1138, %v2085, %v1817
        %v2102 = vsel %vm1138, %v2086, %v1819
        %v2103 = vsel %vm1138, %v2087, %v1821
        %v2104 = vsel %vm1138, %v2088, %v1823
        %v2105 = vsel %vm1138, %v2089, %v1825
        %v2106 = vsel %vm1138, %v2090, %v1827
        %v2107 = vsel %vm1138, %v2091, %v1829
        %v2108 = vsel %vm1138, %v2092, %v1831
        %v2109 = vsel %vm1138, %v2093, %v1833
        %v2110 = vsel %vm1138, %v2094, %v1835
        %v2111 = vsel %vm1138, %v2095, %v1837
        %v2112 = vsel %vm1138, %v2096, %v1839
        %v2113 = vsel %vm1138, %v2097, %v1841
        %v2114 = vsel %vm1159, %v2098, %v1859
        %v2115 = vsel %vm1159, %v2099, %v1861
        %v2116 = vsel %vm1159, %v2100, %v1863
        %v2117 = vsel %vm1159, %v2101, %v1865
        %v2118 = vsel %vm1159, %v2102, %v1867
        %v2119 = vsel %vm1159, %v2103, %v1869
        %v2120 = vsel %vm1159, %v2104, %v1871
        %v2121 = vsel %vm1159, %v2105, %v1873
        %v2122 = vsel %vm1159, %v2106, %v1875
        %v2123 = vsel %vm1159, %v2107, %v1877
        %v2124 = vsel %vm1159, %v2108, %v1879
        %v2125 = vsel %vm1159, %v2109, %v1881
        %v2126 = vsel %vm1159, %v2110, %v1883
        %v2127 = vsel %vm1159, %v2111, %v1885
        %v2128 = vsel %vm1159, %v2112, %v1887
        %v2129 = vsel %vm1159, %v2113, %v1889
        %v2130 = vsel %vm1180, %v2114, %v1907
        %v2131 = vsel %vm1180, %v2115, %v1909
        %v2132 = vsel %vm1180, %v2116, %v1911
        %v2133 = vsel %vm1180, %v2117, %v1913
        %v2134 = vsel %vm1180, %v2118, %v1915
        %v2135 = vsel %vm1180, %v2119, %v1917
        %v2136 = vsel %vm1180, %v2120, %v1919
        %v2137 = vsel %vm1180, %v2121, %v1921
        %v2138 = vsel %vm1180, %v2122, %v1923
        %v2139 = vsel %vm1180, %v2123, %v1925
        %v2140 = vsel %vm1180, %v2124, %v1927
        %v2141 = vsel %vm1180, %v2125, %v1929
        %v2142 = vsel %vm1180, %v2126, %v1931
        %v2143 = vsel %vm1180, %v2127, %v1933
        %v2144 = vsel %vm1180, %v2128, %v1935
        %v2145 = vsel %vm1180, %v2129, %v1937
        %v2146 = vsel %vm1201, %v2130, %v1955
        %v2147 = vsel %vm1201, %v2131, %v1957
        %v2148 = vsel %vm1201, %v2132, %v1959
        %v2149 = vsel %vm1201, %v2133, %v1961
        %v2150 = vsel %vm1201, %v2134, %v1963
        %v2151 = vsel %vm1201, %v2135, %v1965
        %v2152 = vsel %vm1201, %v2136, %v1967
        %v2153 = vsel %vm1201, %v2137, %v1969
        %v2154 = vsel %vm1201, %v2138, %v1971
        %v2155 = vsel %vm1201, %v2139, %v1973
        %v2156 = vsel %vm1201, %v2140, %v1975
        %v2157 = vsel %vm1201, %v2141, %v1977
        %v2158 = vsel %vm1201, %v2142, %v1979
        %v2159 = vsel %vm1201, %v2143, %v1981
        %v2160 = vsel %vm1201, %v2144, %v1983
        %v2161 = vsel %vm1201, %v2145, %v1985
        %v2162 = vsel %vm1222, %v2146, %v2003
        %v2163 = vsel %vm1222, %v2147, %v2005
        %v2164 = vsel %vm1222, %v2148, %v2007
        %v2165 = vsel %vm1222, %v2149, %v2009
        %v2166 = vsel %vm1222, %v2150, %v2011
        %v2167 = vsel %vm1222, %v2151, %v2013
        %v2168 = vsel %vm1222, %v2152, %v2015
        %v2169 = vsel %vm1222, %v2153, %v2017
        %v2170 = vsel %vm1222, %v2154, %v2019
        %v2171 = vsel %vm1222, %v2155, %v2021
        %v2172 = vsel %vm1222, %v2156, %v2023
        %v2173 = vsel %vm1222, %v2157, %v2025
        %v2174 = vsel %vm1222, %v2158, %v2027
        %v2175 = vsel %vm1222, %v2159, %v2029
        %v2176 = vsel %vm1222, %v2160, %v2031
        %v2177 = vsel %vm1222, %v2161, %v2033
        %v2178 = vpack.c.bf16 %v2163, %v2162
        %v2179 = vpack.c.bf16 %v2165, %v2164
        %v2180 = vpack.c.bf16 %v2167, %v2166
        %v2181 = vpack.c.bf16 %v2169, %v2168
        %v2182 = vpack.c.bf16 %v2171, %v2170
        %v2183 = vpack.c.bf16 %v2173, %v2172
        %v2184 = vpack.c.bf16 %v2175, %v2174
        %v2185 = vpack.c.bf16 %v2177, %v2176
        %v2186 = vld [vmem:[%s4] sm:$0xf]
        %v2187 = vld [vmem:[%s4 + $0x4] sm:$0xf]
        %v2188 = vld [vmem:[%s4 + $0x8] sm:$0xf]
        %v2189 = vld [vmem:[%s4 + $0xc] sm:$0xf]
        %v2190 = vld [vmem:[%s4 + $0x10] sm:$0x3]
        %v2192 = vlaneseq
        %v2193 = vshrl.u32 %v2192, 7
        %v2194 = vsub.s32 0, %v2193
        %v2195 = vrot.slane %v1535, %v2194
        %v2202 = vunpack.c.l.b16 %v2186
        %v2203 = vunpack.c.l.b16 %v2187
        %v2204 = vunpack.c.l.b16 %v2188
        %v2205 = vunpack.c.l.b16 %v2189
        %v2206 = vunpack.c.l.b16 %v2190
        %v2207 = vpack.c.b16 %v2203, %v2202
        %v2208 = vpack.c.b16 %v2205, %v2204
        %v2209 = vpack.c.b16 %v2206, %v2206
        %v2213 = vsel %vm1279, %v2178, 0
        %v2216 = vsel %vm1279, %v2179, 0
        %v2219 = vsel %vm1279, %v2180, 0
        %v2222 = vsel %vm1279, %v2181, 0
        %v2225 = vsel %vm1279, %v2182, 0
        %v2228 = vsel %vm1279, %v2183, 0
        %v2231 = vsel %vm1279, %v2184, 0
        %v2234 = vsel %vm1279, %v2185, 0
        %v2237 = vsel %vm1310, %v2209, 0
        %2239 = vmatprep.subr.bf16.mxu0 0
        %2240 = vmatpush1.bf16.msra.mxu0 %v2207
        %2241 = vmatprep.subr.bf16.mxu0 0
        %2242 = vmatpush1.bf16.msra.mxu0 %v2208
        %2243 = vmatprep.subr.bf16.mxu0 0
        %2244 = vmatpush1.bf16.msra.mxu0 %v2237
        %2245 = vmatprep.subr.bf16.mxu0 0
        %2246 = vmatpush1.bf16.msra.mxu0 0
        %2247 = vmatprep.subr.bf16.mxu0 0
        %2248 = vmatpush1.bf16.msra.mxu0 0
        %2249 = vmatprep.subr.bf16.mxu0 0
        %2250 = vmatpush1.bf16.msra.mxu0 0
        %2251 = vmatprep.subr.bf16.mxu0 0
        %2252 = vmatpush1.bf16.msra.mxu0 0
        %2253 = vmatprep.subr.bf16.mxu0 0
        %2254 = vmatpush1.bf16.msra.mxu0 0
        %2255 = vmatprep.subr.bf16.mxu0 0
        %2256 = vmatpush1.bf16.msra.mxu0 0
        %2257 = vmatprep.subr.bf16.mxu0 0
        %2258 = vmatpush1.bf16.msra.mxu0 0
        %2259 = vmatprep.subr.bf16.mxu0 0
        %2260 = vmatpush1.bf16.msra.mxu0 0
        %2261 = vmatprep.subr.bf16.mxu0 0
        %2262 = vmatpush1.bf16.msra.mxu0 0
        %2263 = vmatprep.subr.bf16.mxu0 0
        %2264 = vmatpush1.bf16.msra.mxu0 0
        %2265 = vmatprep.subr.bf16.mxu0 0
        %2266 = vmatpush1.bf16.msra.mxu0 0
        %2267 = vmatprep.subr.bf16.mxu0 0
        %2268 = vmatpush1.bf16.msra.mxu0 0
        %2269 = vmatprep.subr.bf16.mxu0 0
        %2270 = vmatpush1.bf16.msra.mxu0 0
        %2271 = vmatprep.mubr.bf16.mxu0 0
        %2272 = vmatmul.mubr.bf16.gmra.mrb[0].mxu0 %v2213
        %v2273 = vpop.f32.mrb[0].mxu0
        %v2274 = vadd.f32 %v2195, %v2273
        %v2275 = vpop.f32.mrb[0].mxu0
        %v2276 = vpop.f32.mrb[0].mxu0
        %v2277 = vadd.f32 %v2195, %v2276
        %v2278 = vpop.f32.mrb[0].mxu0
        %2279 = vmatprep.mubr.bf16.mxu0 0
        %2280 = vmatmul.mubr.bf16.gmra.mrb[0].mxu0 %v2216
        %v2281 = vpop.f32.mrb[0].mxu0
        %v2282 = vadd.f32 %v2195, %v2281
        %v2283 = vpop.f32.mrb[0].mxu0
        %v2284 = vpop.f32.mrb[0].mxu0
        %v2285 = vadd.f32 %v2195, %v2284
        %v2286 = vpop.f32.mrb[0].mxu0
        %2287 = vmatprep.mubr.bf16.mxu0 0
        %2288 = vmatmul.mubr.bf16.gmra.mrb[0].mxu0 %v2219
        %v2289 = vpop.f32.mrb[0].mxu0
        %v2290 = vadd.f32 %v2195, %v2289
        %v2291 = vpop.f32.mrb[0].mxu0
        %v2292 = vpop.f32.mrb[0].mxu0
        %v2293 = vadd.f32 %v2195, %v2292
        %v2294 = vpop.f32.mrb[0].mxu0
        %2295 = vmatprep.mubr.bf16.mxu0 0
        %2296 = vmatmul.mubr.bf16.gmra.mrb[0].mxu0 %v2222
        %v2297 = vpop.f32.mrb[0].mxu0
        %v2298 = vadd.f32 %v2195, %v2297
        %v2299 = vpop.f32.mrb[0].mxu0
        %v2300 = vpop.f32.mrb[0].mxu0
        %v2301 = vadd.f32 %v2195, %v2300
        %v2302 = vpop.f32.mrb[0].mxu0
        %2303 = vmatprep.mubr.bf16.mxu0 0
        %2304 = vmatmul.mubr.bf16.gmra.mrb[0].mxu0 %v2225
        %v2305 = vpop.f32.mrb[0].mxu0
        %v2306 = vadd.f32 %v2195, %v2305
        %v2307 = vpop.f32.mrb[0].mxu0
        %v2308 = vpop.f32.mrb[0].mxu0
        %v2309 = vadd.f32 %v2195, %v2308
        %v2310 = vpop.f32.mrb[0].mxu0
        %2311 = vmatprep.mubr.bf16.mxu0 0
        %2312 = vmatmul.mubr.bf16.gmra.mrb[0].mxu0 %v2228
        %v2313 = vpop.f32.mrb[0].mxu0
        %v2314 = vadd.f32 %v2195, %v2313
        %v2315 = vpop.f32.mrb[0].mxu0
        %v2316 = vpop.f32.mrb[0].mxu0
        %v2317 = vadd.f32 %v2195, %v2316
        %v2318 = vpop.f32.mrb[0].mxu0
        %2319 = vmatprep.mubr.bf16.mxu0 0
        %2320 = vmatmul.mubr.bf16.gmra.mrb[0].mxu0 %v2231
        %v2321 = vpop.f32.mrb[0].mxu0
        %v2322 = vadd.f32 %v2195, %v2321
        %v2323 = vpop.f32.mrb[0].mxu0
        %v2324 = vpop.f32.mrb[0].mxu0
        %v2325 = vadd.f32 %v2195, %v2324
        %v2326 = vpop.f32.mrb[0].mxu0
        %2327 = vmatprep.mubr.bf16.mxu0 0
        %2328 = vmatmul.mubr.bf16.gmra.mrb[0].mxu0 %v2234
        %v2329 = vpop.f32.mrb[0].mxu0
        %v2330 = vadd.f32 %v2195, %v2329
        %v2331 = vpop.f32.mrb[0].mxu0
        %v2332 = vpop.f32.mrb[0].mxu0
        %v2333 = vadd.f32 %v2195, %v2332
        %v2334 = vpop.f32.mrb[0].mxu0
        %2335 = vdwg.mxu0
        %v2336 = vmax.f32 %v2274, 0.0
        %v2337 = vmax.f32 %v2277, 0.0
        %v2338 = vmax.f32 %v2282, 0.0
        %v2339 = vmax.f32 %v2285, 0.0
        %v2340 = vmax.f32 %v2290, 0.0
        %v2341 = vmax.f32 %v2293, 0.0
        %v2342 = vmax.f32 %v2298, 0.0
        %v2343 = vmax.f32 %v2301, 0.0
        %v2344 = vmax.f32 %v2306, 0.0
        %v2345 = vmax.f32 %v2309, 0.0
        %v2346 = vmax.f32 %v2314, 0.0
        %v2347 = vmax.f32 %v2317, 0.0
        %v2348 = vmax.f32 %v2322, 0.0
        %v2349 = vmax.f32 %v2325, 0.0
        %v2350 = vmax.f32 %v2330, 0.0
        %v2351 = vmax.f32 %v2333, 0.0
        %v2352 = vpack.c.bf16 %v2337, %v2336
        %v2353 = vpack.c.bf16 %v2339, %v2338
        %v2354 = vpack.c.bf16 %v2341, %v2340
        %v2355 = vpack.c.bf16 %v2343, %v2342
        %v2356 = vpack.c.bf16 %v2345, %v2344
        %v2357 = vpack.c.bf16 %v2347, %v2346
        %v2358 = vpack.c.bf16 %v2349, %v2348
        %v2359 = vpack.c.bf16 %v2351, %v2350
        %v2360 = vld [vmem:[%s6] sm:$0x3]
        %v2361 = vld [vmem:[%s7] sm:$0xf]
        %2363 = vset.pattern.permute.xlu0 0
        %2364 = vperm.xlu0 %2363, %v2361
        %v2365 = vpop.permute.xlu0 %2364
        %v2368 = vsel %vm1075, %v2360, 0
        %v2371 = vsel %vm1075, %v2352, 0
        %v2374 = vsel %vm1075, %v2353, 0
        %v2377 = vsel %vm1075, %v2354, 0
        %v2380 = vsel %vm1075, %v2355, 0
        %v2383 = vsel %vm1075, %v2356, 0
        %v2386 = vsel %vm1075, %v2357, 0
        %v2389 = vsel %vm1075, %v2358, 0
        %v2392 = vsel %vm1075, %v2359, 0
        %2394 = vmatprep.subr.bf16.mxu0 0
        %2395 = vmatpush1.bf16.xpose.msra.mxu0 %v2371
        %2396 = vmatprep.subr.bf16.mxu0 0
        %2397 = vmatpush1.bf16.xpose.msra.mxu0 %v2374
        %2398 = vmatprep.subr.bf16.mxu0 0
        %2399 = vmatpush1.bf16.xpose.msra.mxu0 %v2377
        %2400 = vmatprep.subr.bf16.mxu0 0
        %2401 = vmatpush1.bf16.xpose.msra.mxu0 %v2380
        %2402 = vmatprep.subr.bf16.mxu0 0
        %2403 = vmatpush1.bf16.xpose.msra.mxu0 %v2383
        %2404 = vmatprep.subr.bf16.mxu0 0
        %2405 = vmatpush1.bf16.xpose.msra.mxu0 %v2386
        %2406 = vmatprep.subr.bf16.mxu0 0
        %2407 = vmatpush1.bf16.xpose.msra.mxu0 %v2389
        %2408 = vmatprep.subr.bf16.mxu0 0
        %2409 = vmatpush1.bf16.xpose.msra.mxu0 %v2392
        %2410 = vmatprep.subr.bf16.mxu0 0
        %2411 = vmatpush1.bf16.xpose.msra.mxu0 0
        %2412 = vmatprep.subr.bf16.mxu0 0
        %2413 = vmatpush1.bf16.xpose.msra.mxu0 0
        %2414 = vmatprep.subr.bf16.mxu0 0
        %2415 = vmatpush1.bf16.xpose.msra.mxu0 0
        %2416 = vmatprep.subr.bf16.mxu0 0
        %2417 = vmatpush1.bf16.xpose.msra.mxu0 0
        %2418 = vmatprep.subr.bf16.mxu0 0
        %2419 = vmatpush1.bf16.xpose.msra.mxu0 0
        %2420 = vmatprep.subr.bf16.mxu0 0
        %2421 = vmatpush1.bf16.xpose.msra.mxu0 0
        %2422 = vmatprep.subr.bf16.mxu0 0
        %2423 = vmatpush1.bf16.xpose.msra.mxu0 0
        %2424 = vmatprep.subr.bf16.mxu0 0
        %2425 = vmatpush1.bf16.xpose.msra.mxu0 0
        %2426 = vmatprep.mubr.bf16.mxu0 0
        %2427 = vmatmul.mubr.bf16.gmra.mrb[0].mxu0 %v2368
        %v2428 = vpop.f32.mrb[0].mxu0
        %v2429 = vadd.f32 %v2365, %v2428
        %v2430 = vpop.f32.mrb[0].mxu0
        %v2431 = vpop.f32.mrb[0].mxu0
        %v2432 = vpop.f32.mrb[0].mxu0
        %2433 = vdwg.mxu0
        %v2434 = vld [vmem:[%s362] sm:$0xf]
        %v2435 = vadd.f32 %v2429, %v2434
        %v2436 = vmax.f32 %v2435, 0.0
        %2437 = vst [vmem:[%s345] sm:$0xf] %v2436
        %s2438 = sand.u32 %s228, 1
        %s2439 = scalar_lea.sflag [#allocation4], %s2438
        %s2440 = sand.u32 %s228, 1
        %s2441 = smul.addr %s2440, 4
        %s2442 = scalar_lea.vmem [#allocation3], %s2441
        // Predicated region
        $region61: #{tpu_custom_call.1} parent=51 // pred_check
          %p2443 = pneg %p238
        $region62: #{tpu_custom_call.1} parent=51 // pred_check_branch
          %2445 = sbr.rel (%p2443) target = $region64
        $region63: #{tpu_custom_call.1} parent=51 // pred_region
          %s2447 = ssub.s32 64, 64
          %2448 = vsyncadd %s2439, %s2447
          %s2449 = smul.addr %s26, 2
          %s2450 = sadd.s32 %s27, %s2449
          %s2451 = smul.addr %s2450, 64
          %s2452 = scalar_lea.hbm %s8, %s2451
          %s2454 = sshll.u32 %s2442, 4
          %s2455 = int_to_ptr.vmem [resolvable:$true] %s2454
          %2457 = dma.vmem_to_hbm [thread:$0]  %s2455, 64, %s2452, %s2439
        $region64: #{tpu_custom_call.1} parent=51 // pred_fallthru
          _
      $region52: #{tpu_custom_call.1} parent=5 // pred_fallthru
        _
      %p2458 = scmp.le.s32.totalorder 2, %s17
      // Predicated region
      $region65: #{tpu_custom_call.1} parent=5 // pred_check
        %p2459 = pneg %p2458
      $region66: #{tpu_custom_call.1} parent=5 // pred_check_branch
        %2461 = sbr.rel (%p2459) target = $region68
      $region67: #{tpu_custom_call.1} parent=5 // pred_region
        %s2462 = ssub.s32 %s17, 2
        // Predicated region
        $region69: #{tpu_custom_call.1} parent=67 // pred_check
          %p2463 = pneg %p244
        $region70: #{tpu_custom_call.1} parent=67 // pred_check_branch
          %2465 = sbr.rel (%p2463) target = $region72
        $region71: #{tpu_custom_call.1} parent=67 // pred_region
          %s2466 = sand.u32 %s229, 1
          %s2467 = scalar_lea.sflag [#allocation4], %s2466
          %s2468 = sand.u32 %s229, 1
          %s2469 = smul.addr %s2468, 4
          %s2470 = scalar_lea.vmem [#allocation3], %s2469
          %2471 = dma.done %s2467, 64
        $region72: #{tpu_custom_call.1} parent=67 // pred_fallthru
          _
      $region68: #{tpu_custom_call.1} parent=5 // pred_fallthru
        _
    $region6: #{tpu_custom_call.1} parent=1 // loop_footer
      %s21 = sadd.s32 1, %s17
    $region7: #{tpu_custom_call.1} parent=1 // loop_footer_branch
      %16 = sbr.rel target = $region3
    $region8: #{tpu_custom_call.1} parent=1 // loop_exit
      _
    %2472 = vsyncpa [#allocation4], 1
    %s2473 = scalar_lea.sflag [#allocation4], 1
    %2474 = vsyncpa %s2473, 1

</llo_original>
